<compile_context>
chip_gen: v5e
topology: v5e:2x2
jax: 0.10.0
libtpu: 0.0.40
codegen_flags: <defaults>
</compile_context>

<pallas_src>
import functools

import jax
import jax.numpy as jnp
from jax.experimental import pallas as pl
from jax.experimental.pallas import tpu as pltpu


_VMEM_SPEC = pl.BlockSpec(memory_space=pltpu.MemorySpace.VMEM)


# ------------------------------ fused kernel --------------------------------


def _fused_gan_kernel(xt_ref, z_ref, gw1_ref, gb1_ref, gw2_ref, gb2_ref,
                      dw1t_ref, db1c_ref, dw2c_ref, db2_ref,
                      gen_ref, loss_d_ref, loss_g_ref,
                      *, npoints, pdim):
    """Fused: disc(x^T), generator(z), disc(gen^T), BCE losses."""
    dw1t = dw1t_ref[...]                 # (DH, pdim)   per-point lift weights^T
    db1c = db1c_ref[...][None, :, :]     # (1, DH, 1)
    dw2c = dw2c_ref[...][None, :, :]     # (1, DH, 1)
    db2 = db2_ref[...]                   # (1, 1)

    def disc_logit(coords):
        # coords: list of `pdim` arrays, each (B, 1, N) — one per input channel.
        # Pointwise (kernel-size-1) lift as VPU broadcast-FMAs: (B, DH, N).
        acc = coords[0] * dw1t[None, :, 0:1]
        for c in range(1, pdim):
            acc = acc + coords[c] * dw1t[None, :, c:c + 1]
        f = jnp.maximum(acc + db1c, 0.0)                 # (B, DH, N)
        pooled = jnp.max(f, axis=2, keepdims=True)       # (B, DH, 1) symmetric max-pool
        return jnp.sum(pooled * dw2c, axis=1) + db2      # (B, 1) logits

    # ---- discriminator(x^T): x already channels-first (B, pdim, N) ----
    x_t = xt_ref[...]
    real_logit = disc_logit([x_t[:, c:c + 1, :] for c in range(pdim)])

    # ---- generator(z): 2-layer MLP, tanh, coordinate-major (B, pdim*N) ----
    h = jnp.maximum(
        jnp.dot(z_ref[...], gw1_ref[...], preferred_element_type=jnp.float32)
        + gb1_ref[...], 0.0)
    gen = jnp.tanh(
        jnp.dot(h, gw2_ref[...], preferred_element_type=jnp.float32)
        + gb2_ref[...])
    gen_ref[...] = gen                                   # only HBM tensor writeback

    # ---- discriminator(gen^T): read generator activation straight from vregs ----
    synth_logit = disc_logit(
        [gen[:, c * npoints:(c + 1) * npoints][:, None, :] for c in range(pdim)])

    # ---- losses, computed from logits for numerical stability:
    #      -log(sigmoid(l)) = softplus(-l), -log(1 - sigmoid(l)) = softplus(l)
    def softplus(v):
        return jnp.maximum(v, 0.0) + jnp.log(1.0 + jnp.exp(-jnp.abs(v)))

    loss_d_ref[...] = jnp.mean(softplus(-real_logit) + softplus(synth_logit),
                               keepdims=True)
    loss_g_ref[...] = jnp.mean(softplus(-synth_logit), keepdims=True)


# -------------------------------- wrapper ------------------------------------


@jax.jit
def vanilla_gan_forward(x, z, params):
    """Mirrors vanilla_gan.forward: returns (gen_out, loss_d, loss_g)."""
    B, N, D = x.shape
    x_t = jnp.transpose(x, (0, 2, 1))          # torch.transpose(x, 1, 2)

    kernel = functools.partial(_fused_gan_kernel, npoints=N, pdim=D)
    gen_grouped, loss_d, loss_g = pl.pallas_call(
        kernel,
        out_shape=(
            jax.ShapeDtypeStruct((B, D * N), jnp.float32),   # generator out (coord-major)
            jax.ShapeDtypeStruct((1, 1), jnp.float32),       # loss_d
            jax.ShapeDtypeStruct((1, 1), jnp.float32),       # loss_g
        ),
        in_specs=[_VMEM_SPEC] * 10,
        out_specs=(_VMEM_SPEC, _VMEM_SPEC, _VMEM_SPEC),
    )(x_t, z,
      params["gw1"], params["gb1"], params["gw2"], params["gb2"],
      params["dw1_t"], params["db1_col"], params["dw2_col"], params["db2"])

    # coordinate-major (B, 3*N) -> point cloud (B, N, 3), i.e. generator(z)'s layout
    gen_out = gen_grouped.reshape(B, D, N).transpose(0, 2, 1)
    return gen_out, loss_d.reshape(()), loss_g.reshape(())


# --------------------------- pure-JAX reference ------------------------------


def _reference_forward(x, z, params):
    B, N, D = x.shape

    def disc(pts_t):  # (B, D, N) channels-first, like the Conv1d discriminator
        f = jnp.maximum(
            jnp.einsum("hc,bcn->bhn", params["dw1_t"], pts_t)
            + params["db1_col"][None, :, :], 0.0)
        pooled = jnp.max(f, axis=2)                            # (B, DH)
        logit = pooled @ params["dw2_col"] + params["db2"]     # (B, 1)
        return logit, jax.nn.sigmoid(logit)

    _, real_prob = disc(jnp.transpose(x, (0, 2, 1)))
    h = jnp.maximum(z @ params["gw1"] + params["gb1"], 0.0)
    gen_out = jnp.tanh(h @ params["gw2"] + params["gb2"]
                       ).reshape(B, D, N).transpose(0, 2, 1)
    _, synth_prob = disc(jnp.transpose(gen_out, (0, 2, 1)))
    loss_d = jnp.mean(-jnp.log(real_prob) - jnp.log(1.0 - synth_prob))
    loss_g = jnp.mean(-jnp.log(synth_prob))
    return gen_out, loss_d, loss_g


# ---------------------------------- main -------------------------------------


if __name__ == "__main__":
    # small shapes consistent with the module's forward (noise_dim default = 128)
    B, N, D = 2, 64, 3          # batch, npoints, point dim
    Z, GH, DH = 128, 128, 128   # noise dim, generator hidden, discriminator hidden

    key = jax.random.PRNGKey(0)
    ks = jax.random.split(key, 6)

    params = {
        # generator: z -> hidden -> (3*npoints) coordinate-major output
        "gw1": jax.random.normal(ks[0], (Z, GH), jnp.float32) * 0.1,
        "gb1": jnp.zeros((1, GH), jnp.float32),
        "gw2": jax.random.normal(ks[1], (GH, D * N), jnp.float32) * 0.1,
        "gb2": jnp.zeros((1, D * N), jnp.float32),
        # discriminator: pointwise (3 -> DH) lift (stored transposed), max-pool, (DH -> 1)
        "dw1_t": jax.random.normal(ks[2], (DH, D), jnp.float32) * 0.1,
        "db1_col": jnp.zeros((DH, 1), jnp.float32),
        "dw2_col": jax.random.normal(ks[3], (DH, 1), jnp.float32) * 0.1,
        "db2": jnp.zeros((1, 1), jnp.float32),
    }

    x = jax.random.normal(ks[4], (B, N, D), jnp.float32)   # real point cloud
    z = jax.random.normal(ks[5], (B, Z), jnp.float32)      # noise

    gen_out, loss_d, loss_g = vanilla_gan_forward(x, z, params)
    jax.block_until_ready((gen_out, loss_d, loss_g))

    ref_gen, ref_ld, ref_lg = _reference_forward(x, z, params)

    assert gen_out.shape == (B, N, D)
    assert loss_d.shape == () and loss_g.shape == ()
    assert bool(jnp.isfinite(loss_d)) and bool(jnp.isfinite(loss_g))
    assert jnp.allclose(gen_out, ref_gen, atol=2e-5, rtol=2e-4)
    assert jnp.allclose(loss_d, ref_ld, atol=2e-5, rtol=2e-4)
    assert jnp.allclose(loss_g, ref_lg, atol=2e-5, rtol=2e-4)
    print("KERNEL_OK")
</pallas_src>

<mosaic_0001>
module attributes {stable_mosaic.version = 11 : i64} {
  func.func @_fused_gan_kernel(%arg0: memref<2x3x64xf32, #tpu.memory_space<vmem>>, %arg1: memref<2x128xf32, #tpu.memory_space<vmem>>, %arg2: memref<128x128xf32, #tpu.memory_space<vmem>>, %arg3: memref<1x128xf32, #tpu.memory_space<vmem>>, %arg4: memref<128x192xf32, #tpu.memory_space<vmem>>, %arg5: memref<1x192xf32, #tpu.memory_space<vmem>>, %arg6: memref<128x3xf32, #tpu.memory_space<vmem>>, %arg7: memref<128x1xf32, #tpu.memory_space<vmem>>, %arg8: memref<128x1xf32, #tpu.memory_space<vmem>>, %arg9: memref<1x1xf32, #tpu.memory_space<vmem>>, %arg10: memref<2x192xf32, #tpu.memory_space<vmem>>, %arg11: memref<1x1xf32, #tpu.memory_space<vmem>>, %arg12: memref<1x1xf32, #tpu.memory_space<vmem>>) attributes {dimension_semantics = [], scalar_prefetch = 0 : i64, scratch_operands = 0 : i64, tpu.core_type = #tpu.core_type<tc>} {
    %c0 = arith.constant 0 : index
    %c0_0 = arith.constant 0 : index
    %0 = vector.load %arg6[%c0, %c0_0] : memref<128x3xf32, #tpu.memory_space<vmem>>, vector<128x3xf32>
    %c0_1 = arith.constant 0 : index
    %c0_2 = arith.constant 0 : index
    %1 = vector.load %arg7[%c0_1, %c0_2] : memref<128x1xf32, #tpu.memory_space<vmem>>, vector<128x1xf32>
    %2 = vector.shape_cast %1 : vector<128x1xf32> to vector<1x128x1xf32>
    %c0_3 = arith.constant 0 : index
    %c0_4 = arith.constant 0 : index
    %3 = vector.load %arg8[%c0_3, %c0_4] : memref<128x1xf32, #tpu.memory_space<vmem>>, vector<128x1xf32>
    %4 = vector.shape_cast %3 : vector<128x1xf32> to vector<1x128x1xf32>
    %c0_5 = arith.constant 0 : index
    %c0_6 = arith.constant 0 : index
    %5 = vector.load %arg9[%c0_5, %c0_6] : memref<1x1xf32, #tpu.memory_space<vmem>>, vector<1x1xf32>
    %c0_7 = arith.constant 0 : index
    %c0_8 = arith.constant 0 : index
    %c0_9 = arith.constant 0 : index
    %6 = vector.load %arg0[%c0_7, %c0_8, %c0_9] : memref<2x3x64xf32, #tpu.memory_space<vmem>>, vector<2x3x64xf32>
    %7 = vector.extract_strided_slice %6 {offsets = [0, 0, 0], sizes = [2, 1, 64], strides = [1, 1, 1]} : vector<2x3x64xf32> to vector<2x1x64xf32>
    %8 = vector.extract_strided_slice %6 {offsets = [0, 1, 0], sizes = [2, 1, 64], strides = [1, 1, 1]} : vector<2x3x64xf32> to vector<2x1x64xf32>
    %9 = vector.extract_strided_slice %6 {offsets = [0, 2, 0], sizes = [2, 1, 64], strides = [1, 1, 1]} : vector<2x3x64xf32> to vector<2x1x64xf32>
    %10 = vector.extract_strided_slice %0 {offsets = [0, 0], sizes = [128, 1], strides = [1, 1]} : vector<128x3xf32> to vector<128x1xf32>
    %11 = vector.shape_cast %10 : vector<128x1xf32> to vector<1x128x1xf32>
    %12 = vector.broadcast %7 : vector<2x1x64xf32> to vector<2x128x64xf32>
    %13 = vector.broadcast %11 : vector<1x128x1xf32> to vector<2x128x64xf32>
    %14 = arith.mulf %12, %13 : vector<2x128x64xf32>
    %15 = vector.extract_strided_slice %0 {offsets = [0, 1], sizes = [128, 1], strides = [1, 1]} : vector<128x3xf32> to vector<128x1xf32>
    %16 = vector.shape_cast %15 : vector<128x1xf32> to vector<1x128x1xf32>
    %17 = vector.broadcast %8 : vector<2x1x64xf32> to vector<2x128x64xf32>
    %18 = vector.broadcast %16 : vector<1x128x1xf32> to vector<2x128x64xf32>
    %19 = arith.mulf %17, %18 : vector<2x128x64xf32>
    %20 = arith.addf %14, %19 : vector<2x128x64xf32>
    %21 = vector.extract_strided_slice %0 {offsets = [0, 2], sizes = [128, 1], strides = [1, 1]} : vector<128x3xf32> to vector<128x1xf32>
    %22 = vector.shape_cast %21 : vector<128x1xf32> to vector<1x128x1xf32>
    %23 = vector.broadcast %9 : vector<2x1x64xf32> to vector<2x128x64xf32>
    %24 = vector.broadcast %22 : vector<1x128x1xf32> to vector<2x128x64xf32>
    %25 = arith.mulf %23, %24 : vector<2x128x64xf32>
    %26 = arith.addf %20, %25 : vector<2x128x64xf32>
    %27 = vector.broadcast %2 : vector<1x128x1xf32> to vector<2x128x64xf32>
    %28 = arith.addf %26, %27 : vector<2x128x64xf32>
    %cst = arith.constant 0.000000e+00 : f32
    %29 = vector.broadcast %cst : f32 to vector<2x128x64xf32>
    %30 = arith.maximumf %28, %29 : vector<2x128x64xf32>
    %cst_10 = arith.constant dense<0xFF800000> : vector<2x128xf32>
    %31 = vector.multi_reduction <maximumf>, %30, %cst_10 [2] : vector<2x128x64xf32> to vector<2x128xf32>
    %32 = vector.shape_cast %31 : vector<2x128xf32> to vector<2x128x1xf32>
    %33 = vector.broadcast %4 : vector<1x128x1xf32> to vector<2x128x1xf32>
    %34 = arith.mulf %32, %33 : vector<2x128x1xf32>
    %cst_11 = arith.constant dense<0.000000e+00> : vector<2x1xf32>
    %35 = vector.multi_reduction <add>, %34, %cst_11 [1] : vector<2x128x1xf32> to vector<2x1xf32>
    %36 = vector.broadcast %5 : vector<1x1xf32> to vector<2x1xf32>
    %37 = arith.addf %35, %36 : vector<2x1xf32>
    %c0_12 = arith.constant 0 : index
    %c0_13 = arith.constant 0 : index
    %38 = vector.load %arg1[%c0_12, %c0_13] : memref<2x128xf32, #tpu.memory_space<vmem>>, vector<2x128xf32>
    %c0_14 = arith.constant 0 : index
    %c0_15 = arith.constant 0 : index
    %39 = vector.load %arg2[%c0_14, %c0_15] : memref<128x128xf32, #tpu.memory_space<vmem>>, vector<128x128xf32>
    %cst_16 = arith.constant dense<0.000000e+00> : vector<2x128xf32>
    %40 = tpu.matmul %38, %39, %cst_16 {dimension_numbers = #tpu.dot_dimension_numbers<[1], [0], [0], [1], [0, 0, 1, 1], [], []>} : vector<2x128xf32>, vector<128x128xf32>, vector<2x128xf32> -> vector<2x128xf32>
    %c0_17 = arith.constant 0 : index
    %c0_18 = arith.constant 0 : index
    %41 = vector.load %arg3[%c0_17, %c0_18] : memref<1x128xf32, #tpu.memory_space<vmem>>, vector<1x128xf32>
    %42 = vector.broadcast %41 : vector<1x128xf32> to vector<2x128xf32>
    %43 = arith.addf %40, %42 : vector<2x128xf32>
    %cst_19 = arith.constant 0.000000e+00 : f32
    %44 = vector.broadcast %cst_19 : f32 to vector<2x128xf32>
    %45 = arith.maximumf %43, %44 : vector<2x128xf32>
    %c0_20 = arith.constant 0 : index
    %c0_21 = arith.constant 0 : index
    %46 = vector.load %arg4[%c0_20, %c0_21] : memref<128x192xf32, #tpu.memory_space<vmem>>, vector<128x192xf32>
    %cst_22 = arith.constant dense<0.000000e+00> : vector<2x192xf32>
    %47 = tpu.matmul %45, %46, %cst_22 {dimension_numbers = #tpu.dot_dimension_numbers<[1], [0], [0], [1], [0, 0, 1, 1], [], []>} : vector<2x128xf32>, vector<128x192xf32>, vector<2x192xf32> -> vector<2x192xf32>
    %c0_23 = arith.constant 0 : index
    %c0_24 = arith.constant 0 : index
    %48 = vector.load %arg5[%c0_23, %c0_24] : memref<1x192xf32, #tpu.memory_space<vmem>>, vector<1x192xf32>
    %49 = vector.broadcast %48 : vector<1x192xf32> to vector<2x192xf32>
    %50 = arith.addf %47, %49 : vector<2x192xf32>
    %51 = math.tanh %50 : vector<2x192xf32>
    %c0_25 = arith.constant 0 : index
    %c0_26 = arith.constant 0 : index
    %52 = vector.load %arg10[%c0_25, %c0_26] : memref<2x192xf32, #tpu.memory_space<vmem>>, vector<2x192xf32>
    tpu.vector_store %arg10[%c0_25, %c0_26], %51 {strides = array<i32>} : memref<2x192xf32, #tpu.memory_space<vmem>>, vector<2x192xf32>,
    %53 = vector.extract_strided_slice %51 {offsets = [0, 0], sizes = [2, 64], strides = [1, 1]} : vector<2x192xf32> to vector<2x64xf32>
    %54 = vector.shape_cast %53 : vector<2x64xf32> to vector<2x1x64xf32>
    %55 = vector.extract_strided_slice %51 {offsets = [0, 64], sizes = [2, 64], strides = [1, 1]} : vector<2x192xf32> to vector<2x64xf32>
    %56 = vector.shape_cast %55 : vector<2x64xf32> to vector<2x1x64xf32>
    %57 = vector.extract_strided_slice %51 {offsets = [0, 128], sizes = [2, 64], strides = [1, 1]} : vector<2x192xf32> to vector<2x64xf32>
    %58 = vector.shape_cast %57 : vector<2x64xf32> to vector<2x1x64xf32>
    %59 = vector.extract_strided_slice %0 {offsets = [0, 0], sizes = [128, 1], strides = [1, 1]} : vector<128x3xf32> to vector<128x1xf32>
    %60 = vector.shape_cast %59 : vector<128x1xf32> to vector<1x128x1xf32>
    %61 = vector.broadcast %54 : vector<2x1x64xf32> to vector<2x128x64xf32>
    %62 = vector.broadcast %60 : vector<1x128x1xf32> to vector<2x128x64xf32>
    %63 = arith.mulf %61, %62 : vector<2x128x64xf32>
    %64 = vector.extract_strided_slice %0 {offsets = [0, 1], sizes = [128, 1], strides = [1, 1]} : vector<128x3xf32> to vector<128x1xf32>
    %65 = vector.shape_cast %64 : vector<128x1xf32> to vector<1x128x1xf32>
    %66 = vector.broadcast %56 : vector<2x1x64xf32> to vector<2x128x64xf32>
    %67 = vector.broadcast %65 : vector<1x128x1xf32> to vector<2x128x64xf32>
    %68 = arith.mulf %66, %67 : vector<2x128x64xf32>
    %69 = arith.addf %63, %68 : vector<2x128x64xf32>
    %70 = vector.extract_strided_slice %0 {offsets = [0, 2], sizes = [128, 1], strides = [1, 1]} : vector<128x3xf32> to vector<128x1xf32>
    %71 = vector.shape_cast %70 : vector<128x1xf32> to vector<1x128x1xf32>
    %72 = vector.broadcast %58 : vector<2x1x64xf32> to vector<2x128x64xf32>
    %73 = vector.broadcast %71 : vector<1x128x1xf32> to vector<2x128x64xf32>
    %74 = arith.mulf %72, %73 : vector<2x128x64xf32>
    %75 = arith.addf %69, %74 : vector<2x128x64xf32>
    %76 = vector.broadcast %2 : vector<1x128x1xf32> to vector<2x128x64xf32>
    %77 = arith.addf %75, %76 : vector<2x128x64xf32>
    %cst_27 = arith.constant 0.000000e+00 : f32
    %78 = vector.broadcast %cst_27 : f32 to vector<2x128x64xf32>
    %79 = arith.maximumf %77, %78 : vector<2x128x64xf32>
    %cst_28 = arith.constant dense<0xFF800000> : vector<2x128xf32>
    %80 = vector.multi_reduction <maximumf>, %79, %cst_28 [2] : vector<2x128x64xf32> to vector<2x128xf32>
    %81 = vector.shape_cast %80 : vector<2x128xf32> to vector<2x128x1xf32>
    %82 = vector.broadcast %4 : vector<1x128x1xf32> to vector<2x128x1xf32>
    %83 = arith.mulf %81, %82 : vector<2x128x1xf32>
    %cst_29 = arith.constant dense<0.000000e+00> : vector<2x1xf32>
    %84 = vector.multi_reduction <add>, %83, %cst_29 [1] : vector<2x128x1xf32> to vector<2x1xf32>
    %85 = vector.broadcast %5 : vector<1x1xf32> to vector<2x1xf32>
    %86 = arith.addf %84, %85 : vector<2x1xf32>
    %cst_30 = arith.constant 0.000000e+00 : f32
    %87 = vector.broadcast %cst_30 : f32 to vector<2x1xf32>
    %88 = arith.subf %87, %37 : vector<2x1xf32>
    %cst_31 = arith.constant 0.000000e+00 : f32
    %89 = vector.broadcast %cst_31 : f32 to vector<2x1xf32>
    %90 = arith.maximumf %88, %89 : vector<2x1xf32>
    %91 = math.absf %88 : vector<2x1xf32>
    %cst_32 = arith.constant 0.000000e+00 : f32
    %92 = vector.broadcast %cst_32 : f32 to vector<2x1xf32>
    %93 = arith.subf %92, %91 : vector<2x1xf32>
    %94 = math.exp %93 : vector<2x1xf32>
    %cst_33 = arith.constant 1.000000e+00 : f32
    %95 = vector.broadcast %cst_33 : f32 to vector<2x1xf32>
    %96 = arith.addf %95, %94 : vector<2x1xf32>
    %97 = math.log %96 : vector<2x1xf32>
    %98 = arith.addf %90, %97 : vector<2x1xf32>
    %cst_34 = arith.constant 0.000000e+00 : f32
    %99 = vector.broadcast %cst_34 : f32 to vector<2x1xf32>
    %100 = arith.maximumf %86, %99 : vector<2x1xf32>
    %101 = math.absf %86 : vector<2x1xf32>
    %cst_35 = arith.constant 0.000000e+00 : f32
    %102 = vector.broadcast %cst_35 : f32 to vector<2x1xf32>
    %103 = arith.subf %102, %101 : vector<2x1xf32>
    %104 = math.exp %103 : vector<2x1xf32>
    %cst_36 = arith.constant 1.000000e+00 : f32
    %105 = vector.broadcast %cst_36 : f32 to vector<2x1xf32>
    %106 = arith.addf %105, %104 : vector<2x1xf32>
    %107 = math.log %106 : vector<2x1xf32>
    %108 = arith.addf %100, %107 : vector<2x1xf32>
    %109 = arith.addf %98, %108 : vector<2x1xf32>
    %110 = vector.shape_cast %109 : vector<2x1xf32> to vector<1x2x1xf32>
    %cst_37 = arith.constant dense<0.000000e+00> : vector<1xf32>
    %111 = vector.multi_reduction <add>, %110, %cst_37 [1, 2] : vector<1x2x1xf32> to vector<1xf32>
    %112 = vector.shape_cast %111 : vector<1xf32> to vector<1x1x1xf32>
    %113 = vector.extract %112[0, 0, 0] : f32 from vector<1x1x1xf32>
    %114 = vector.broadcast %113 : f32 to vector<1x1xf32>
    %cst_38 = arith.constant 2.000000e+00 : f32
    %115 = vector.broadcast %cst_38 : f32 to vector<1x1xf32>
    %116 = arith.divf %114, %115 : vector<1x1xf32>
    %c0_39 = arith.constant 0 : index
    %c0_40 = arith.constant 0 : index
    %117 = vector.load %arg11[%c0_39, %c0_40] : memref<1x1xf32, #tpu.memory_space<vmem>>, vector<1x1xf32>
    tpu.vector_store %arg11[%c0_39, %c0_40], %116 {strides = array<i32>} : memref<1x1xf32, #tpu.memory_space<vmem>>, vector<1x1xf32>,
    %cst_41 = arith.constant 0.000000e+00 : f32
    %118 = vector.broadcast %cst_41 : f32 to vector<2x1xf32>
    %119 = arith.subf %118, %86 : vector<2x1xf32>
    %cst_42 = arith.constant 0.000000e+00 : f32
    %120 = vector.broadcast %cst_42 : f32 to vector<2x1xf32>
    %121 = arith.maximumf %119, %120 : vector<2x1xf32>
    %122 = math.absf %119 : vector<2x1xf32>
    %cst_43 = arith.constant 0.000000e+00 : f32
    %123 = vector.broadcast %cst_43 : f32 to vector<2x1xf32>
    %124 = arith.subf %123, %122 : vector<2x1xf32>
    %125 = math.exp %124 : vector<2x1xf32>
    %cst_44 = arith.constant 1.000000e+00 : f32
    %126 = vector.broadcast %cst_44 : f32 to vector<2x1xf32>
    %127 = arith.addf %126, %125 : vector<2x1xf32>
    %128 = math.log %127 : vector<2x1xf32>
    %129 = arith.addf %121, %128 : vector<2x1xf32>
    %130 = vector.shape_cast %129 : vector<2x1xf32> to vector<1x2x1xf32>
    %cst_45 = arith.constant dense<0.000000e+00> : vector<1xf32>
    %131 = vector.multi_reduction <add>, %130, %cst_45 [1, 2] : vector<1x2x1xf32> to vector<1xf32>
    %132 = vector.shape_cast %131 : vector<1xf32> to vector<1x1x1xf32>
    %133 = vector.extract %132[0, 0, 0] : f32 from vector<1x1x1xf32>
    %134 = vector.broadcast %133 : f32 to vector<1x1xf32>
    %cst_46 = arith.constant 2.000000e+00 : f32
    %135 = vector.broadcast %cst_46 : f32 to vector<1x1xf32>
    %136 = arith.divf %134, %135 : vector<1x1xf32>
    %c0_47 = arith.constant 0 : index
    %c0_48 = arith.constant 0 : index
    %137 = vector.load %arg12[%c0_47, %c0_48] : memref<1x1xf32, #tpu.memory_space<vmem>>, vector<1x1xf32>
    tpu.vector_store %arg12[%c0_47, %c0_48], %136 {strides = array<i32>} : memref<1x1xf32, #tpu.memory_space<vmem>>, vector<1x1xf32>,
    return
  }
}

</mosaic_0001>

<llo_original>
// kernel: vanilla_gan_forward.1
$region0: #{vanilla_gan_forward.1}
  #allocation0 [shape = 'u32[]', space=smem, size = 0x4, offset = 0x4, fixed_abs, tag = 'smem constant byte address 0x4 - core index']
  #allocation1 [shape = 'u32[72,128]{1,0:T(1,128)}', space=vmem, size = 0x9000, scoped, tag = 'internal scratch']
  #allocation2 [shape = 'f32[1,1]{1,0:T(1,128)S(1)}', space=vmem, size = 0x200, scoped, tag = 'scoped memory for vanilla_gan_forward.1']
  %s0 = inlined_call_operand.vmem [shape: f32[2,3,64], index: 0, kind: input, shape index: {}]
  %s1 = inlined_call_operand.vmem [shape: f32[2,128], index: 1, kind: input, shape index: {}]
  %s2 = inlined_call_operand.vmem [shape: f32[128,128], index: 2, kind: input, shape index: {}]
  %s3 = inlined_call_operand.vmem [shape: f32[1,128], index: 3, kind: input, shape index: {}]
  %s4 = inlined_call_operand.vmem [shape: f32[128,192], index: 4, kind: input, shape index: {}]
  %s5 = inlined_call_operand.vmem [shape: f32[1,192], index: 5, kind: input, shape index: {}]
  %s6 = inlined_call_operand.vmem [shape: f32[128,3], index: 6, kind: input, shape index: {}]
  %s7 = inlined_call_operand.vmem [shape: f32[128,1], index: 7, kind: input, shape index: {}]
  %s8 = inlined_call_operand.vmem [shape: f32[128,1], index: 8, kind: input, shape index: {}]
  %s9 = inlined_call_operand.<no memory space> [shape: f32[1,1], index: 9, kind: input, shape index: {}]
  %s10 = inlined_call_operand.vmem [shape: f32[2,192], index: 10, kind: output, shape index: {0}]
  %s11 = inlined_call_operand.hbm [shape: f32[1,1], index: 11, kind: output, shape index: {1}]
  %s12 = inlined_call_operand.hbm [shape: f32[1,1], index: 12, kind: output, shape index: {2}]
  %13 = xla_tuple %s10, %s11, %s12
  %s14 = sld [smem:[#allocation0]]
  $region66: #{vanilla_gan_forward.1} parent=0
    _
  %s16 = ssub.s32 1, %s14
  %s17 = scalar_select 0, %s16, %s14
  %v18 = vstv %s9
  %19 = vst [vmem:[#allocation2] sm:$0x1] %v18
  $region1: #{vanilla_gan_forward.1} parent=0
    #allocation3 [shape = 'u8[512]{0}', space=vmem, size = 0x400, scoped, tag = 'output window, operand 1, single buffered']
    #allocation4 [shape = 's32[1]{0}', space=sflag, size = 0x4, scoped, tag = 'scoped memory for vanilla_gan_forward.1']
    #allocation5 [shape = 'u8[512]{0}', space=vmem, size = 0x400, scoped, tag = 'output window, operand 2, single buffered']
    #allocation6 [shape = 's32[1]{0}', space=sflag, size = 0x4, scoped, tag = 'scoped memory for vanilla_gan_forward.1']
    %20 = vsyncpa [#allocation4], 0
    %21 = vsyncpa [#allocation6], 0
    // Predicated region
    $region2: #{vanilla_gan_forward.1} parent=1 // pred_check
      _
    $region3: #{vanilla_gan_forward.1} parent=1 // pred_check_branch
      %23 = sbr.rel (0) target = $region5
    $region4: #{vanilla_gan_forward.1} parent=1 // pred_region
      _
    $region5: #{vanilla_gan_forward.1} parent=1 // pred_fallthru
      _
    // Predicated region
    $region6: #{vanilla_gan_forward.1} parent=1 // pred_check
      _
    $region7: #{vanilla_gan_forward.1} parent=1 // pred_check_branch
      %25 = sbr.rel (0) target = $region9
    $region8: #{vanilla_gan_forward.1} parent=1 // pred_region
      _
    $region9: #{vanilla_gan_forward.1} parent=1 // pred_fallthru
      _
    // Predicated region
    $region10: #{vanilla_gan_forward.1} parent=1 // pred_check
      _
    $region11: #{vanilla_gan_forward.1} parent=1 // pred_check_branch
      %27 = sbr.rel (0) target = $region13
    $region12: #{vanilla_gan_forward.1} parent=1 // pred_region
      _
    $region13: #{vanilla_gan_forward.1} parent=1 // pred_fallthru
      _
    // Predicated region
    $region14: #{vanilla_gan_forward.1} parent=1 // pred_check
      _
    $region15: #{vanilla_gan_forward.1} parent=1 // pred_check_branch
      %29 = sbr.rel (0) target = $region17
    $region16: #{vanilla_gan_forward.1} parent=1 // pred_region
      _
    $region17: #{vanilla_gan_forward.1} parent=1 // pred_fallthru
      _
    // Predicated region
    $region18: #{vanilla_gan_forward.1} parent=1 // pred_check
      _
    $region19: #{vanilla_gan_forward.1} parent=1 // pred_check_branch
      %31 = sbr.rel (0) target = $region21
    $region20: #{vanilla_gan_forward.1} parent=1 // pred_region
      _
    $region21: #{vanilla_gan_forward.1} parent=1 // pred_fallthru
      _
    // Predicated region
    $region22: #{vanilla_gan_forward.1} parent=1 // pred_check
      _
    $region23: #{vanilla_gan_forward.1} parent=1 // pred_check_branch
      %33 = sbr.rel (0) target = $region25
    $region24: #{vanilla_gan_forward.1} parent=1 // pred_region
      _
    $region25: #{vanilla_gan_forward.1} parent=1 // pred_fallthru
      _
    // Predicated region
    $region26: #{vanilla_gan_forward.1} parent=1 // pred_check
      _
    $region27: #{vanilla_gan_forward.1} parent=1 // pred_check_branch
      %35 = sbr.rel (0) target = $region29
    $region28: #{vanilla_gan_forward.1} parent=1 // pred_region
      _
    $region29: #{vanilla_gan_forward.1} parent=1 // pred_fallthru
      _
    // Predicated region
    $region30: #{vanilla_gan_forward.1} parent=1 // pred_check
      _
    $region31: #{vanilla_gan_forward.1} parent=1 // pred_check_branch
      %37 = sbr.rel (0) target = $region33
    $region32: #{vanilla_gan_forward.1} parent=1 // pred_region
      _
    $region33: #{vanilla_gan_forward.1} parent=1 // pred_fallthru
      _
    // Predicated region
    $region34: #{vanilla_gan_forward.1} parent=1 // pred_check
      _
    $region35: #{vanilla_gan_forward.1} parent=1 // pred_check_branch
      %39 = sbr.rel (0) target = $region37
    $region36: #{vanilla_gan_forward.1} parent=1 // pred_region
      _
    $region37: #{vanilla_gan_forward.1} parent=1 // pred_fallthru
      _
    // Predicated region
    $region38: #{vanilla_gan_forward.1} parent=1 // pred_check
      _
    $region39: #{vanilla_gan_forward.1} parent=1 // pred_check_branch
      %41 = sbr.rel (0) target = $region41
    $region40: #{vanilla_gan_forward.1} parent=1 // pred_region
      _
    $region41: #{vanilla_gan_forward.1} parent=1 // pred_fallthru
      _
    %v42 = vld [vmem:[%s6] sm:$0xff]
    %v43 = vld [vmem:[%s6 + $0x8] sm:$0xff]
    %v44 = vld [vmem:[%s6 + $0x10] sm:$0xff]
    %v45 = vld [vmem:[%s6 + $0x18] sm:$0xff]
    %v46 = vld [vmem:[%s6 + $0x20] sm:$0xff]
    %v47 = vld [vmem:[%s6 + $0x28] sm:$0xff]
    %v48 = vld [vmem:[%s6 + $0x30] sm:$0xff]
    %v49 = vld [vmem:[%s6 + $0x38] sm:$0xff]
    %v50 = vld [vmem:[%s6 + $0x40] sm:$0xff]
    %v51 = vld [vmem:[%s6 + $0x48] sm:$0xff]
    %v52 = vld [vmem:[%s6 + $0x50] sm:$0xff]
    %v53 = vld [vmem:[%s6 + $0x58] sm:$0xff]
    %v54 = vld [vmem:[%s6 + $0x60] sm:$0xff]
    %v55 = vld [vmem:[%s6 + $0x68] sm:$0xff]
    %v56 = vld [vmem:[%s6 + $0x70] sm:$0xff]
    %v57 = vld [vmem:[%s6 + $0x78] sm:$0xff]
    %v58 = vld [vmem:[%s7] sm:$0xff]
    %v59 = vld [vmem:[%s7 + $0x8] sm:$0xff]
    %v60 = vld [vmem:[%s7 + $0x10] sm:$0xff]
    %v61 = vld [vmem:[%s7 + $0x18] sm:$0xff]
    %v62 = vld [vmem:[%s7 + $0x20] sm:$0xff]
    %v63 = vld [vmem:[%s7 + $0x28] sm:$0xff]
    %v64 = vld [vmem:[%s7 + $0x30] sm:$0xff]
    %v65 = vld [vmem:[%s7 + $0x38] sm:$0xff]
    %v66 = vld [vmem:[%s7 + $0x40] sm:$0xff]
    %v67 = vld [vmem:[%s7 + $0x48] sm:$0xff]
    %v68 = vld [vmem:[%s7 + $0x50] sm:$0xff]
    %v69 = vld [vmem:[%s7 + $0x58] sm:$0xff]
    %v70 = vld [vmem:[%s7 + $0x60] sm:$0xff]
    %v71 = vld [vmem:[%s7 + $0x68] sm:$0xff]
    %v72 = vld [vmem:[%s7 + $0x70] sm:$0xff]
    %v73 = vld [vmem:[%s7 + $0x78] sm:$0xff]
    %v74 = vld [vmem:[%s8] sm:$0xff]
    %v75 = vld [vmem:[%s8 + $0x8] sm:$0xff]
    %v76 = vld [vmem:[%s8 + $0x10] sm:$0xff]
    %v77 = vld [vmem:[%s8 + $0x18] sm:$0xff]
    %v78 = vld [vmem:[%s8 + $0x20] sm:$0xff]
    %v79 = vld [vmem:[%s8 + $0x28] sm:$0xff]
    %v80 = vld [vmem:[%s8 + $0x30] sm:$0xff]
    %v81 = vld [vmem:[%s8 + $0x38] sm:$0xff]
    %v82 = vld [vmem:[%s8 + $0x40] sm:$0xff]
    %v83 = vld [vmem:[%s8 + $0x48] sm:$0xff]
    %v84 = vld [vmem:[%s8 + $0x50] sm:$0xff]
    %v85 = vld [vmem:[%s8 + $0x58] sm:$0xff]
    %v86 = vld [vmem:[%s8 + $0x60] sm:$0xff]
    %v87 = vld [vmem:[%s8 + $0x68] sm:$0xff]
    %v88 = vld [vmem:[%s8 + $0x70] sm:$0xff]
    %v89 = vld [vmem:[%s8 + $0x78] sm:$0xff]
    %v90 = vld [vmem:[#allocation2] sm:$0x1]
    %v91 = vld [vmem:[%s0] sm:$0x7]
    %v92 = vld [vmem:[%s0 + $0x4] sm:$0x7]
    %v93 = vperm.slane %v91, 0
    %v94 = vperm.slane %v92, 0
    %96 = vset.pattern.permute.xlu0 0
    %97 = vperm.xlu0 %96, %v42
    %v98 = vpop.permute.xlu0 %97
    %101 = vset.pattern.permute.xlu0 0
    %102 = vperm.xlu0 %101, %v43
    %v103 = vpop.permute.xlu0 %102
    %106 = vset.pattern.permute.xlu0 0
    %107 = vperm.xlu0 %106, %v44
    %v108 = vpop.permute.xlu0 %107
    %111 = vset.pattern.permute.xlu0 0
    %112 = vperm.xlu0 %111, %v45
    %v113 = vpop.permute.xlu0 %112
    %116 = vset.pattern.permute.xlu0 0
    %117 = vperm.xlu0 %116, %v46
    %v118 = vpop.permute.xlu0 %117
    %121 = vset.pattern.permute.xlu0 0
    %122 = vperm.xlu0 %121, %v47
    %v123 = vpop.permute.xlu0 %122
    %126 = vset.pattern.permute.xlu0 0
    %127 = vperm.xlu0 %126, %v48
    %v128 = vpop.permute.xlu0 %127
    %131 = vset.pattern.permute.xlu0 0
    %132 = vperm.xlu0 %131, %v49
    %v133 = vpop.permute.xlu0 %132
    %136 = vset.pattern.permute.xlu0 0
    %137 = vperm.xlu0 %136, %v50
    %v138 = vpop.permute.xlu0 %137
    %141 = vset.pattern.permute.xlu0 0
    %142 = vperm.xlu0 %141, %v51
    %v143 = vpop.permute.xlu0 %142
    %146 = vset.pattern.permute.xlu0 0
    %147 = vperm.xlu0 %146, %v52
    %v148 = vpop.permute.xlu0 %147
    %151 = vset.pattern.permute.xlu0 0
    %152 = vperm.xlu0 %151, %v53
    %v153 = vpop.permute.xlu0 %152
    %156 = vset.pattern.permute.xlu0 0
    %157 = vperm.xlu0 %156, %v54
    %v158 = vpop.permute.xlu0 %157
    %161 = vset.pattern.permute.xlu0 0
    %162 = vperm.xlu0 %161, %v55
    %v163 = vpop.permute.xlu0 %162
    %166 = vset.pattern.permute.xlu0 0
    %167 = vperm.xlu0 %166, %v56
    %v168 = vpop.permute.xlu0 %167
    %171 = vset.pattern.permute.xlu0 0
    %172 = vperm.xlu0 %171, %v57
    %v173 = vpop.permute.xlu0 %172
    %v175 = vmul.f32 %v93, %v98
    %v176 = vmul.f32 %v93, %v103
    %v177 = vmul.f32 %v93, %v108
    %v178 = vmul.f32 %v93, %v113
    %v179 = vmul.f32 %v93, %v118
    %v180 = vmul.f32 %v93, %v123
    %v181 = vmul.f32 %v93, %v128
    %v182 = vmul.f32 %v93, %v133
    %v183 = vmul.f32 %v93, %v138
    %v184 = vmul.f32 %v93, %v143
    %v185 = vmul.f32 %v93, %v148
    %v186 = vmul.f32 %v93, %v153
    %v187 = vmul.f32 %v93, %v158
    %v188 = vmul.f32 %v93, %v163
    %v189 = vmul.f32 %v93, %v168
    %v190 = vmul.f32 %v93, %v173
    %v191 = vmul.f32 %v94, %v98
    %v192 = vmul.f32 %v94, %v103
    %v193 = vmul.f32 %v94, %v108
    %v194 = vmul.f32 %v94, %v113
    %v195 = vmul.f32 %v94, %v118
    %v196 = vmul.f32 %v94, %v123
    %v197 = vmul.f32 %v94, %v128
    %v198 = vmul.f32 %v94, %v133
    %v199 = vmul.f32 %v94, %v138
    %v200 = vmul.f32 %v94, %v143
    %v201 = vmul.f32 %v94, %v148
    %v202 = vmul.f32 %v94, %v153
    %v203 = vmul.f32 %v94, %v158
    %v204 = vmul.f32 %v94, %v163
    %v205 = vmul.f32 %v94, %v168
    %v206 = vmul.f32 %v94, %v173
    %v207 = vperm.slane %v91, 1
    %v208 = vperm.slane %v92, 1
    %209 = vset.pattern.permute.xlu0 1
    %210 = vperm.xlu0 %209, %v42
    %v211 = vpop.permute.xlu0 %210
    %213 = vset.pattern.permute.xlu0 1
    %214 = vperm.xlu0 %213, %v43
    %v215 = vpop.permute.xlu0 %214
    %217 = vset.pattern.permute.xlu0 1
    %218 = vperm.xlu0 %217, %v44
    %v219 = vpop.permute.xlu0 %218
    %221 = vset.pattern.permute.xlu0 1
    %222 = vperm.xlu0 %221, %v45
    %v223 = vpop.permute.xlu0 %222
    %225 = vset.pattern.permute.xlu0 1
    %226 = vperm.xlu0 %225, %v46
    %v227 = vpop.permute.xlu0 %226
    %229 = vset.pattern.permute.xlu0 1
    %230 = vperm.xlu0 %229, %v47
    %v231 = vpop.permute.xlu0 %230
    %233 = vset.pattern.permute.xlu0 1
    %234 = vperm.xlu0 %233, %v48
    %v235 = vpop.permute.xlu0 %234
    %237 = vset.pattern.permute.xlu0 1
    %238 = vperm.xlu0 %237, %v49
    %v239 = vpop.permute.xlu0 %238
    %241 = vset.pattern.permute.xlu0 1
    %242 = vperm.xlu0 %241, %v50
    %v243 = vpop.permute.xlu0 %242
    %245 = vset.pattern.permute.xlu0 1
    %246 = vperm.xlu0 %245, %v51
    %v247 = vpop.permute.xlu0 %246
    %249 = vset.pattern.permute.xlu0 1
    %250 = vperm.xlu0 %249, %v52
    %v251 = vpop.permute.xlu0 %250
    %253 = vset.pattern.permute.xlu0 1
    %254 = vperm.xlu0 %253, %v53
    %v255 = vpop.permute.xlu0 %254
    %257 = vset.pattern.permute.xlu0 1
    %258 = vperm.xlu0 %257, %v54
    %v259 = vpop.permute.xlu0 %258
    %261 = vset.pattern.permute.xlu0 1
    %262 = vperm.xlu0 %261, %v55
    %v263 = vpop.permute.xlu0 %262
    %265 = vset.pattern.permute.xlu0 1
    %266 = vperm.xlu0 %265, %v56
    %v267 = vpop.permute.xlu0 %266
    %269 = vset.pattern.permute.xlu0 1
    %270 = vperm.xlu0 %269, %v57
    %v271 = vpop.permute.xlu0 %270
    %v273 = vmul.f32 %v207, %v211
    %v274 = vmul.f32 %v207, %v215
    %v275 = vmul.f32 %v207, %v219
    %v276 = vmul.f32 %v207, %v223
    %v277 = vmul.f32 %v207, %v227
    %v278 = vmul.f32 %v207, %v231
    %v279 = vmul.f32 %v207, %v235
    %v280 = vmul.f32 %v207, %v239
    %v281 = vmul.f32 %v207, %v243
    %v282 = vmul.f32 %v207, %v247
    %v283 = vmul.f32 %v207, %v251
    %v284 = vmul.f32 %v207, %v255
    %v285 = vmul.f32 %v207, %v259
    %v286 = vmul.f32 %v207, %v263
    %v287 = vmul.f32 %v207, %v267
    %v288 = vmul.f32 %v207, %v271
    %v289 = vmul.f32 %v208, %v211
    %v290 = vmul.f32 %v208, %v215
    %v291 = vmul.f32 %v208, %v219
    %v292 = vmul.f32 %v208, %v223
    %v293 = vmul.f32 %v208, %v227
    %v294 = vmul.f32 %v208, %v231
    %v295 = vmul.f32 %v208, %v235
    %v296 = vmul.f32 %v208, %v239
    %v297 = vmul.f32 %v208, %v243
    %v298 = vmul.f32 %v208, %v247
    %v299 = vmul.f32 %v208, %v251
    %v300 = vmul.f32 %v208, %v255
    %v301 = vmul.f32 %v208, %v259
    %v302 = vmul.f32 %v208, %v263
    %v303 = vmul.f32 %v208, %v267
    %v304 = vmul.f32 %v208, %v271
    %v305 = vadd.f32 %v175, %v273
    %v306 = vadd.f32 %v176, %v274
    %v307 = vadd.f32 %v177, %v275
    %v308 = vadd.f32 %v178, %v276
    %v309 = vadd.f32 %v179, %v277
    %v310 = vadd.f32 %v180, %v278
    %v311 = vadd.f32 %v181, %v279
    %v312 = vadd.f32 %v182, %v280
    %v313 = vadd.f32 %v183, %v281
    %v314 = vadd.f32 %v184, %v282
    %v315 = vadd.f32 %v185, %v283
    %v316 = vadd.f32 %v186, %v284
    %v317 = vadd.f32 %v187, %v285
    %v318 = vadd.f32 %v188, %v286
    %v319 = vadd.f32 %v189, %v287
    %v320 = vadd.f32 %v190, %v288
    %v321 = vadd.f32 %v191, %v289
    %v322 = vadd.f32 %v192, %v290
    %v323 = vadd.f32 %v193, %v291
    %v324 = vadd.f32 %v194, %v292
    %v325 = vadd.f32 %v195, %v293
    %v326 = vadd.f32 %v196, %v294
    %v327 = vadd.f32 %v197, %v295
    %v328 = vadd.f32 %v198, %v296
    %v329 = vadd.f32 %v199, %v297
    %v330 = vadd.f32 %v200, %v298
    %v331 = vadd.f32 %v201, %v299
    %v332 = vadd.f32 %v202, %v300
    %v333 = vadd.f32 %v203, %v301
    %v334 = vadd.f32 %v204, %v302
    %v335 = vadd.f32 %v205, %v303
    %v336 = vadd.f32 %v206, %v304
    %v337 = vperm.slane %v91, 2
    %v338 = vperm.slane %v92, 2
    %339 = vset.pattern.permute.xlu0 2
    %340 = vperm.xlu0 %339, %v42
    %v341 = vpop.permute.xlu0 %340
    %343 = vset.pattern.permute.xlu0 2
    %344 = vperm.xlu0 %343, %v43
    %v345 = vpop.permute.xlu0 %344
    %347 = vset.pattern.permute.xlu0 2
    %348 = vperm.xlu0 %347, %v44
    %v349 = vpop.permute.xlu0 %348
    %351 = vset.pattern.permute.xlu0 2
    %352 = vperm.xlu0 %351, %v45
    %v353 = vpop.permute.xlu0 %352
    %355 = vset.pattern.permute.xlu0 2
    %356 = vperm.xlu0 %355, %v46
    %v357 = vpop.permute.xlu0 %356
    %359 = vset.pattern.permute.xlu0 2
    %360 = vperm.xlu0 %359, %v47
    %v361 = vpop.permute.xlu0 %360
    %363 = vset.pattern.permute.xlu0 2
    %364 = vperm.xlu0 %363, %v48
    %v365 = vpop.permute.xlu0 %364
    %367 = vset.pattern.permute.xlu0 2
    %368 = vperm.xlu0 %367, %v49
    %v369 = vpop.permute.xlu0 %368
    %371 = vset.pattern.permute.xlu0 2
    %372 = vperm.xlu0 %371, %v50
    %v373 = vpop.permute.xlu0 %372
    %375 = vset.pattern.permute.xlu0 2
    %376 = vperm.xlu0 %375, %v51
    %v377 = vpop.permute.xlu0 %376
    %379 = vset.pattern.permute.xlu0 2
    %380 = vperm.xlu0 %379, %v52
    %v381 = vpop.permute.xlu0 %380
    %383 = vset.pattern.permute.xlu0 2
    %384 = vperm.xlu0 %383, %v53
    %v385 = vpop.permute.xlu0 %384
    %387 = vset.pattern.permute.xlu0 2
    %388 = vperm.xlu0 %387, %v54
    %v389 = vpop.permute.xlu0 %388
    %391 = vset.pattern.permute.xlu0 2
    %392 = vperm.xlu0 %391, %v55
    %v393 = vpop.permute.xlu0 %392
    %395 = vset.pattern.permute.xlu0 2
    %396 = vperm.xlu0 %395, %v56
    %v397 = vpop.permute.xlu0 %396
    %399 = vset.pattern.permute.xlu0 2
    %400 = vperm.xlu0 %399, %v57
    %v401 = vpop.permute.xlu0 %400
    %v403 = vmul.f32 %v337, %v341
    %v404 = vmul.f32 %v337, %v345
    %v405 = vmul.f32 %v337, %v349
    %v406 = vmul.f32 %v337, %v353
    %v407 = vmul.f32 %v337, %v357
    %v408 = vmul.f32 %v337, %v361
    %v409 = vmul.f32 %v337, %v365
    %v410 = vmul.f32 %v337, %v369
    %v411 = vmul.f32 %v337, %v373
    %v412 = vmul.f32 %v337, %v377
    %v413 = vmul.f32 %v337, %v381
    %v414 = vmul.f32 %v337, %v385
    %v415 = vmul.f32 %v337, %v389
    %v416 = vmul.f32 %v337, %v393
    %v417 = vmul.f32 %v337, %v397
    %v418 = vmul.f32 %v337, %v401
    %v419 = vmul.f32 %v338, %v341
    %v420 = vmul.f32 %v338, %v345
    %v421 = vmul.f32 %v338, %v349
    %v422 = vmul.f32 %v338, %v353
    %v423 = vmul.f32 %v338, %v357
    %v424 = vmul.f32 %v338, %v361
    %v425 = vmul.f32 %v338, %v365
    %v426 = vmul.f32 %v338, %v369
    %v427 = vmul.f32 %v338, %v373
    %v428 = vmul.f32 %v338, %v377
    %v429 = vmul.f32 %v338, %v381
    %v430 = vmul.f32 %v338, %v385
    %v431 = vmul.f32 %v338, %v389
    %v432 = vmul.f32 %v338, %v393
    %v433 = vmul.f32 %v338, %v397
    %v434 = vmul.f32 %v338, %v401
    %v435 = vadd.f32 %v305, %v403
    %v436 = vadd.f32 %v306, %v404
    %v437 = vadd.f32 %v307, %v405
    %v438 = vadd.f32 %v308, %v406
    %v439 = vadd.f32 %v309, %v407
    %v440 = vadd.f32 %v310, %v408
    %v441 = vadd.f32 %v311, %v409
    %v442 = vadd.f32 %v312, %v410
    %v443 = vadd.f32 %v313, %v411
    %v444 = vadd.f32 %v314, %v412
    %v445 = vadd.f32 %v315, %v413
    %v446 = vadd.f32 %v316, %v414
    %v447 = vadd.f32 %v317, %v415
    %v448 = vadd.f32 %v318, %v416
    %v449 = vadd.f32 %v319, %v417
    %v450 = vadd.f32 %v320, %v418
    %v451 = vadd.f32 %v321, %v419
    %v452 = vadd.f32 %v322, %v420
    %v453 = vadd.f32 %v323, %v421
    %v454 = vadd.f32 %v324, %v422
    %v455 = vadd.f32 %v325, %v423
    %v456 = vadd.f32 %v326, %v424
    %v457 = vadd.f32 %v327, %v425
    %v458 = vadd.f32 %v328, %v426
    %v459 = vadd.f32 %v329, %v427
    %v460 = vadd.f32 %v330, %v428
    %v461 = vadd.f32 %v331, %v429
    %v462 = vadd.f32 %v332, %v430
    %v463 = vadd.f32 %v333, %v431
    %v464 = vadd.f32 %v334, %v432
    %v465 = vadd.f32 %v335, %v433
    %v466 = vadd.f32 %v336, %v434
    %468 = vset.pattern.permute.xlu0 0
    %469 = vperm.xlu0 %468, %v58
    %v470 = vpop.permute.xlu0 %469
    %473 = vset.pattern.permute.xlu0 0
    %474 = vperm.xlu0 %473, %v59
    %v475 = vpop.permute.xlu0 %474
    %478 = vset.pattern.permute.xlu0 0
    %479 = vperm.xlu0 %478, %v60
    %v480 = vpop.permute.xlu0 %479
    %483 = vset.pattern.permute.xlu0 0
    %484 = vperm.xlu0 %483, %v61
    %v485 = vpop.permute.xlu0 %484
    %488 = vset.pattern.permute.xlu0 0
    %489 = vperm.xlu0 %488, %v62
    %v490 = vpop.permute.xlu0 %489
    %493 = vset.pattern.permute.xlu0 0
    %494 = vperm.xlu0 %493, %v63
    %v495 = vpop.permute.xlu0 %494
    %498 = vset.pattern.permute.xlu0 0
    %499 = vperm.xlu0 %498, %v64
    %v500 = vpop.permute.xlu0 %499
    %503 = vset.pattern.permute.xlu0 0
    %504 = vperm.xlu0 %503, %v65
    %v505 = vpop.permute.xlu0 %504
    %508 = vset.pattern.permute.xlu0 0
    %509 = vperm.xlu0 %508, %v66
    %v510 = vpop.permute.xlu0 %509
    %513 = vset.pattern.permute.xlu0 0
    %514 = vperm.xlu0 %513, %v67
    %v515 = vpop.permute.xlu0 %514
    %518 = vset.pattern.permute.xlu0 0
    %519 = vperm.xlu0 %518, %v68
    %v520 = vpop.permute.xlu0 %519
    %523 = vset.pattern.permute.xlu0 0
    %524 = vperm.xlu0 %523, %v69
    %v525 = vpop.permute.xlu0 %524
    %528 = vset.pattern.permute.xlu0 0
    %529 = vperm.xlu0 %528, %v70
    %v530 = vpop.permute.xlu0 %529
    %533 = vset.pattern.permute.xlu0 0
    %534 = vperm.xlu0 %533, %v71
    %v535 = vpop.permute.xlu0 %534
    %538 = vset.pattern.permute.xlu0 0
    %539 = vperm.xlu0 %538, %v72
    %v540 = vpop.permute.xlu0 %539
    %543 = vset.pattern.permute.xlu0 0
    %544 = vperm.xlu0 %543, %v73
    %v545 = vpop.permute.xlu0 %544
    %v547 = vadd.f32 %v435, %v470
    %v548 = vadd.f32 %v436, %v475
    %v549 = vadd.f32 %v437, %v480
    %v550 = vadd.f32 %v438, %v485
    %v551 = vadd.f32 %v439, %v490
    %v552 = vadd.f32 %v440, %v495
    %v553 = vadd.f32 %v441, %v500
    %v554 = vadd.f32 %v442, %v505
    %v555 = vadd.f32 %v443, %v510
    %v556 = vadd.f32 %v444, %v515
    %v557 = vadd.f32 %v445, %v520
    %v558 = vadd.f32 %v446, %v525
    %v559 = vadd.f32 %v447, %v530
    %v560 = vadd.f32 %v448, %v535
    %v561 = vadd.f32 %v449, %v540
    %v562 = vadd.f32 %v450, %v545
    %v563 = vadd.f32 %v451, %v470
    %v564 = vadd.f32 %v452, %v475
    %v565 = vadd.f32 %v453, %v480
    %v566 = vadd.f32 %v454, %v485
    %v567 = vadd.f32 %v455, %v490
    %v568 = vadd.f32 %v456, %v495
    %v569 = vadd.f32 %v457, %v500
    %v570 = vadd.f32 %v458, %v505
    %v571 = vadd.f32 %v459, %v510
    %v572 = vadd.f32 %v460, %v515
    %v573 = vadd.f32 %v461, %v520
    %v574 = vadd.f32 %v462, %v525
    %v575 = vadd.f32 %v463, %v530
    %v576 = vadd.f32 %v464, %v535
    %v577 = vadd.f32 %v465, %v540
    %v578 = vadd.f32 %v466, %v545
    %v579 = vmax.f32 %v547, 0.0
    %v580 = vmax.f32 %v548, 0.0
    %v581 = vmax.f32 %v549, 0.0
    %v582 = vmax.f32 %v550, 0.0
    %v583 = vmax.f32 %v551, 0.0
    %v584 = vmax.f32 %v552, 0.0
    %v585 = vmax.f32 %v553, 0.0
    %v586 = vmax.f32 %v554, 0.0
    %v587 = vmax.f32 %v555, 0.0
    %v588 = vmax.f32 %v556, 0.0
    %v589 = vmax.f32 %v557, 0.0
    %v590 = vmax.f32 %v558, 0.0
    %v591 = vmax.f32 %v559, 0.0
    %v592 = vmax.f32 %v560, 0.0
    %v593 = vmax.f32 %v561, 0.0
    %v594 = vmax.f32 %v562, 0.0
    %v595 = vmax.f32 %v563, 0.0
    %v596 = vmax.f32 %v564, 0.0
    %v597 = vmax.f32 %v565, 0.0
    %v598 = vmax.f32 %v566, 0.0
    %v599 = vmax.f32 %v567, 0.0
    %v600 = vmax.f32 %v568, 0.0
    %v601 = vmax.f32 %v569, 0.0
    %v602 = vmax.f32 %v570, 0.0
    %v603 = vmax.f32 %v571, 0.0
    %v604 = vmax.f32 %v572, 0.0
    %v605 = vmax.f32 %v573, 0.0
    %v606 = vmax.f32 %v574, 0.0
    %v607 = vmax.f32 %v575, 0.0
    %v608 = vmax.f32 %v576, 0.0
    %v609 = vmax.f32 %v577, 0.0
    %v610 = vmax.f32 %v578, 0.0
    %vm611 = vcmask 523264
    %v612 = vsel %vm611, %v579, -inf
    %613 = vmax.xlane.f32.xlu0 %v612
    %v614 = vpop.xlane.xlu0 %613
    %v615 = vsel %vm611, %v580, -inf
    %616 = vmax.xlane.f32.xlu0 %v615
    %v617 = vpop.xlane.xlu0 %616
    %v618 = vsel %vm611, %v581, -inf
    %619 = vmax.xlane.f32.xlu0 %v618
    %v620 = vpop.xlane.xlu0 %619
    %v621 = vsel %vm611, %v582, -inf
    %622 = vmax.xlane.f32.xlu0 %v621
    %v623 = vpop.xlane.xlu0 %622
    %v624 = vsel %vm611, %v583, -inf
    %625 = vmax.xlane.f32.xlu0 %v624
    %v626 = vpop.xlane.xlu0 %625
    %v627 = vsel %vm611, %v584, -inf
    %628 = vmax.xlane.f32.xlu0 %v627
    %v629 = vpop.xlane.xlu0 %628
    %v630 = vsel %vm611, %v585, -inf
    %631 = vmax.xlane.f32.xlu0 %v630
    %v632 = vpop.xlane.xlu0 %631
    %v633 = vsel %vm611, %v586, -inf
    %634 = vmax.xlane.f32.xlu0 %v633
    %v635 = vpop.xlane.xlu0 %634
    %v636 = vsel %vm611, %v587, -inf
    %637 = vmax.xlane.f32.xlu0 %v636
    %v638 = vpop.xlane.xlu0 %637
    %v639 = vsel %vm611, %v588, -inf
    %640 = vmax.xlane.f32.xlu0 %v639
    %v641 = vpop.xlane.xlu0 %640
    %v642 = vsel %vm611, %v589, -inf
    %643 = vmax.xlane.f32.xlu0 %v642
    %v644 = vpop.xlane.xlu0 %643
    %v645 = vsel %vm611, %v590, -inf
    %646 = vmax.xlane.f32.xlu0 %v645
    %v647 = vpop.xlane.xlu0 %646
    %v648 = vsel %vm611, %v591, -inf
    %649 = vmax.xlane.f32.xlu0 %v648
    %v650 = vpop.xlane.xlu0 %649
    %v651 = vsel %vm611, %v592, -inf
    %652 = vmax.xlane.f32.xlu0 %v651
    %v653 = vpop.xlane.xlu0 %652
    %v654 = vsel %vm611, %v593, -inf
    %655 = vmax.xlane.f32.xlu0 %v654
    %v656 = vpop.xlane.xlu0 %655
    %v657 = vsel %vm611, %v594, -inf
    %658 = vmax.xlane.f32.xlu0 %v657
    %v659 = vpop.xlane.xlu0 %658
    %v660 = vsel %vm611, %v595, -inf
    %661 = vmax.xlane.f32.xlu0 %v660
    %v662 = vpop.xlane.xlu0 %661
    %v663 = vsel %vm611, %v596, -inf
    %664 = vmax.xlane.f32.xlu0 %v663
    %v665 = vpop.xlane.xlu0 %664
    %v666 = vsel %vm611, %v597, -inf
    %667 = vmax.xlane.f32.xlu0 %v666
    %v668 = vpop.xlane.xlu0 %667
    %v669 = vsel %vm611, %v598, -inf
    %670 = vmax.xlane.f32.xlu0 %v669
    %v671 = vpop.xlane.xlu0 %670
    %v672 = vsel %vm611, %v599, -inf
    %673 = vmax.xlane.f32.xlu0 %v672
    %v674 = vpop.xlane.xlu0 %673
    %v675 = vsel %vm611, %v600, -inf
    %676 = vmax.xlane.f32.xlu0 %v675
    %v677 = vpop.xlane.xlu0 %676
    %v678 = vsel %vm611, %v601, -inf
    %679 = vmax.xlane.f32.xlu0 %v678
    %v680 = vpop.xlane.xlu0 %679
    %v681 = vsel %vm611, %v602, -inf
    %682 = vmax.xlane.f32.xlu0 %v681
    %v683 = vpop.xlane.xlu0 %682
    %v684 = vsel %vm611, %v603, -inf
    %685 = vmax.xlane.f32.xlu0 %v684
    %v686 = vpop.xlane.xlu0 %685
    %v687 = vsel %vm611, %v604, -inf
    %688 = vmax.xlane.f32.xlu0 %v687
    %v689 = vpop.xlane.xlu0 %688
    %v690 = vsel %vm611, %v605, -inf
    %691 = vmax.xlane.f32.xlu0 %v690
    %v692 = vpop.xlane.xlu0 %691
    %v693 = vsel %vm611, %v606, -inf
    %694 = vmax.xlane.f32.xlu0 %v693
    %v695 = vpop.xlane.xlu0 %694
    %v696 = vsel %vm611, %v607, -inf
    %697 = vmax.xlane.f32.xlu0 %v696
    %v698 = vpop.xlane.xlu0 %697
    %v699 = vsel %vm611, %v608, -inf
    %700 = vmax.xlane.f32.xlu0 %v699
    %v701 = vpop.xlane.xlu0 %700
    %v702 = vsel %vm611, %v609, -inf
    %703 = vmax.xlane.f32.xlu0 %v702
    %v704 = vpop.xlane.xlu0 %703
    %v705 = vsel %vm611, %v610, -inf
    %706 = vmax.xlane.f32.xlu0 %v705
    %v707 = vpop.xlane.xlu0 %706
    %v708 = vmul.f32 %v614, %v74
    %v709 = vmul.f32 %v617, %v75
    %v710 = vmul.f32 %v620, %v76
    %v711 = vmul.f32 %v623, %v77
    %v712 = vmul.f32 %v626, %v78
    %v713 = vmul.f32 %v629, %v79
    %v714 = vmul.f32 %v632, %v80
    %v715 = vmul.f32 %v635, %v81
    %v716 = vmul.f32 %v638, %v82
    %v717 = vmul.f32 %v641, %v83
    %v718 = vmul.f32 %v644, %v84
    %v719 = vmul.f32 %v647, %v85
    %v720 = vmul.f32 %v650, %v86
    %v721 = vmul.f32 %v653, %v87
    %v722 = vmul.f32 %v656, %v88
    %v723 = vmul.f32 %v659, %v89
    %v724 = vmul.f32 %v662, %v74
    %v725 = vmul.f32 %v665, %v75
    %v726 = vmul.f32 %v668, %v76
    %v727 = vmul.f32 %v671, %v77
    %v728 = vmul.f32 %v674, %v78
    %v729 = vmul.f32 %v677, %v79
    %v730 = vmul.f32 %v680, %v80
    %v731 = vmul.f32 %v683, %v81
    %v732 = vmul.f32 %v686, %v82
    %v733 = vmul.f32 %v689, %v83
    %v734 = vmul.f32 %v692, %v84
    %v735 = vmul.f32 %v695, %v85
    %v736 = vmul.f32 %v698, %v86
    %v737 = vmul.f32 %v701, %v87
    %v738 = vmul.f32 %v704, %v88
    %v739 = vmul.f32 %v707, %v89
    %vm740 = vcmask 7168
    %v741 = vsel %vm740, %v708, 0.0
    %v742 = vsel %vm740, %v709, 0.0
    %v743 = vadd.f32 %v741, %v742
    %v744 = vsel %vm740, %v710, 0.0
    %v745 = vadd.f32 %v743, %v744
    %v746 = vsel %vm740, %v711, 0.0
    %v747 = vadd.f32 %v745, %v746
    %v748 = vsel %vm740, %v712, 0.0
    %v749 = vadd.f32 %v747, %v748
    %v750 = vsel %vm740, %v713, 0.0
    %v751 = vadd.f32 %v749, %v750
    %v752 = vsel %vm740, %v714, 0.0
    %v753 = vadd.f32 %v751, %v752
    %v754 = vsel %vm740, %v715, 0.0
    %v755 = vadd.f32 %v753, %v754
    %v756 = vsel %vm740, %v716, 0.0
    %v757 = vadd.f32 %v755, %v756
    %v758 = vsel %vm740, %v717, 0.0
    %v759 = vadd.f32 %v757, %v758
    %v760 = vsel %vm740, %v718, 0.0
    %v761 = vadd.f32 %v759, %v760
    %v762 = vsel %vm740, %v719, 0.0
    %v763 = vadd.f32 %v761, %v762
    %v764 = vsel %vm740, %v720, 0.0
    %v765 = vadd.f32 %v763, %v764
    %v766 = vsel %vm740, %v721, 0.0
    %v767 = vadd.f32 %v765, %v766
    %v768 = vsel %vm740, %v722, 0.0
    %v769 = vadd.f32 %v767, %v768
    %v770 = vsel %vm740, %v723, 0.0
    %v771 = vadd.f32 %v769, %v770
    %v772 = vrot.slane %v771, 4
    %v773 = vadd.f32 %v771, %v772
    %v774 = vrot.slane %v773, 2
    %v775 = vadd.f32 %v773, %v774
    %v776 = vrot.slane %v775, 1
    %v777 = vadd.f32 %v775, %v776
    %v778 = vsel %vm740, %v724, 0.0
    %v779 = vsel %vm740, %v725, 0.0
    %v780 = vadd.f32 %v778, %v779
    %v781 = vsel %vm740, %v726, 0.0
    %v782 = vadd.f32 %v780, %v781
    %v783 = vsel %vm740, %v727, 0.0
    %v784 = vadd.f32 %v782, %v783
    %v785 = vsel %vm740, %v728, 0.0
    %v786 = vadd.f32 %v784, %v785
    %v787 = vsel %vm740, %v729, 0.0
    %v788 = vadd.f32 %v786, %v787
    %v789 = vsel %vm740, %v730, 0.0
    %v790 = vadd.f32 %v788, %v789
    %v791 = vsel %vm740, %v731, 0.0
    %v792 = vadd.f32 %v790, %v791
    %v793 = vsel %vm740, %v732, 0.0
    %v794 = vadd.f32 %v792, %v793
    %v795 = vsel %vm740, %v733, 0.0
    %v796 = vadd.f32 %v794, %v795
    %v797 = vsel %vm740, %v734, 0.0
    %v798 = vadd.f32 %v796, %v797
    %v799 = vsel %vm740, %v735, 0.0
    %v800 = vadd.f32 %v798, %v799
    %v801 = vsel %vm740, %v736, 0.0
    %v802 = vadd.f32 %v800, %v801
    %v803 = vsel %vm740, %v737, 0.0
    %v804 = vadd.f32 %v802, %v803
    %v805 = vsel %vm740, %v738, 0.0
    %v806 = vadd.f32 %v804, %v805
    %v807 = vsel %vm740, %v739, 0.0
    %v808 = vadd.f32 %v806, %v807
    %v809 = vrot.slane %v808, 4
    %v810 = vadd.f32 %v808, %v809
    %v811 = vrot.slane %v810, 2
    %v812 = vadd.f32 %v810, %v811
    %v813 = vrot.slane %v812, 1
    %v814 = vadd.f32 %v812, %v813
    %v816 = vperm.slane %v90, 0
    %v818 = vadd.f32 %v777, %v816
    %v819 = vadd.f32 %v814, %v816
    %v820 = vld [vmem:[%s1] sm:$0x3]
    %v821 = vld [vmem:[%s2] sm:$0xff]
    %v822 = vld [vmem:[%s2 + $0x8] sm:$0xff]
    %v823 = vld [vmem:[%s2 + $0x10] sm:$0xff]
    %v824 = vld [vmem:[%s2 + $0x18] sm:$0xff]
    %v825 = vld [vmem:[%s2 + $0x20] sm:$0xff]
    %v826 = vld [vmem:[%s2 + $0x28] sm:$0xff]
    %v827 = vld [vmem:[%s2 + $0x30] sm:$0xff]
    %v828 = vld [vmem:[%s2 + $0x38] sm:$0xff]
    %v829 = vld [vmem:[%s2 + $0x40] sm:$0xff]
    %v830 = vld [vmem:[%s2 + $0x48] sm:$0xff]
    %v831 = vld [vmem:[%s2 + $0x50] sm:$0xff]
    %v832 = vld [vmem:[%s2 + $0x58] sm:$0xff]
    %v833 = vld [vmem:[%s2 + $0x60] sm:$0xff]
    %v834 = vld [vmem:[%s2 + $0x68] sm:$0xff]
    %v835 = vld [vmem:[%s2 + $0x70] sm:$0xff]
    %v836 = vld [vmem:[%s2 + $0x78] sm:$0xff]
    %v837 = vld [vmem:[%s3] sm:$0x1]
    %v839 = vperm.slane %v837, 0
    %841 = vmatpush.msra.mxu0 %v836
    %842 = vmatpush.msra.mxu0 %v835
    %843 = vmatpush.msra.mxu0 %v834
    %844 = vmatpush.msra.mxu0 %v833
    %845 = vmatpush.msra.mxu0 %v832
    %846 = vmatpush.msra.mxu0 %v831
    %847 = vmatpush.msra.mxu0 %v830
    %848 = vmatpush.msra.mxu0 %v829
    %849 = vmatpush.msra.mxu0 %v828
    %850 = vmatpush.msra.mxu0 %v827
    %851 = vmatpush.msra.mxu0 %v826
    %852 = vmatpush.msra.mxu0 %v825
    %853 = vmatpush.msra.mxu0 %v824
    %854 = vmatpush.msra.mxu0 %v823
    %855 = vmatpush.msra.mxu0 %v822
    %856 = vmatpush.msra.mxu0 %v821
    %857 = vmatmul.f32.gmra.mxu0 %v820
    %v858 = vpop.f32.mrf.mxu0
    %v859 = vadd.f32 %v839, %v858
    %860 = vdwg.mxu0
    %v861 = vmax.f32 %v859, 0.0
    %v862 = vld [vmem:[%s4] sm:$0xff]
    %v863 = vld [vmem:[%s4 + $0x8] sm:$0xff]
    %v864 = vld [vmem:[%s4 + $0x10] sm:$0xff]
    %v865 = vld [vmem:[%s4 + $0x18] sm:$0xff]
    %v866 = vld [vmem:[%s4 + $0x20] sm:$0xff]
    %v867 = vld [vmem:[%s4 + $0x28] sm:$0xff]
    %v868 = vld [vmem:[%s4 + $0x30] sm:$0xff]
    %v869 = vld [vmem:[%s4 + $0x38] sm:$0xff]
    %v870 = vld [vmem:[%s4 + $0x40] sm:$0xff]
    %v871 = vld [vmem:[%s4 + $0x48] sm:$0xff]
    %v872 = vld [vmem:[%s4 + $0x50] sm:$0xff]
    %v873 = vld [vmem:[%s4 + $0x58] sm:$0xff]
    %v874 = vld [vmem:[%s4 + $0x60] sm:$0xff]
    %v875 = vld [vmem:[%s4 + $0x68] sm:$0xff]
    %v876 = vld [vmem:[%s4 + $0x70] sm:$0xff]
    %v877 = vld [vmem:[%s4 + $0x78] sm:$0xff]
    %v878 = vld [vmem:[%s4 + $0x80] sm:$0xff]
    %v879 = vld [vmem:[%s4 + $0x88] sm:$0xff]
    %v880 = vld [vmem:[%s4 + $0x90] sm:$0xff]
    %v881 = vld [vmem:[%s4 + $0x98] sm:$0xff]
    %v882 = vld [vmem:[%s4 + $0xa0] sm:$0xff]
    %v883 = vld [vmem:[%s4 + $0xa8] sm:$0xff]
    %v884 = vld [vmem:[%s4 + $0xb0] sm:$0xff]
    %v885 = vld [vmem:[%s4 + $0xb8] sm:$0xff]
    %v886 = vld [vmem:[%s4 + $0xc0] sm:$0xff]
    %v887 = vld [vmem:[%s4 + $0xc8] sm:$0xff]
    %v888 = vld [vmem:[%s4 + $0xd0] sm:$0xff]
    %v889 = vld [vmem:[%s4 + $0xd8] sm:$0xff]
    %v890 = vld [vmem:[%s4 + $0xe0] sm:$0xff]
    %v891 = vld [vmem:[%s4 + $0xe8] sm:$0xff]
    %v892 = vld [vmem:[%s4 + $0xf0] sm:$0xff]
    %v893 = vld [vmem:[%s4 + $0xf8] sm:$0xff]
    %v894 = vld [vmem:[%s5] sm:$0x3]
    %v896 = vperm.slane %v894, 0
    %v897 = vperm.slane %v894, 1
    %900 = vmatpush.msra.mxu0 %v892
    %901 = vmatpush.msra.mxu0 %v890
    %902 = vmatpush.msra.mxu0 %v888
    %903 = vmatpush.msra.mxu0 %v886
    %904 = vmatpush.msra.mxu0 %v884
    %905 = vmatpush.msra.mxu0 %v882
    %906 = vmatpush.msra.mxu0 %v880
    %907 = vmatpush.msra.mxu0 %v878
    %908 = vmatpush.msra.mxu0 %v876
    %909 = vmatpush.msra.mxu0 %v874
    %910 = vmatpush.msra.mxu0 %v872
    %911 = vmatpush.msra.mxu0 %v870
    %912 = vmatpush.msra.mxu0 %v868
    %913 = vmatpush.msra.mxu0 %v866
    %914 = vmatpush.msra.mxu0 %v864
    %915 = vmatpush.msra.mxu0 %v862
    %916 = vmatmul.f32.gmra.mxu0 %v861
    %v917 = vpop.f32.mrf.mxu0
    %v918 = vadd.f32 %v896, %v917
    %919 = vdwg.mxu0
    %920 = vmatpush.msra.mxu0 %v893
    %921 = vmatpush.msra.mxu0 %v891
    %922 = vmatpush.msra.mxu0 %v889
    %923 = vmatpush.msra.mxu0 %v887
    %924 = vmatpush.msra.mxu0 %v885
    %925 = vmatpush.msra.mxu0 %v883
    %926 = vmatpush.msra.mxu0 %v881
    %927 = vmatpush.msra.mxu0 %v879
    %928 = vmatpush.msra.mxu0 %v877
    %929 = vmatpush.msra.mxu0 %v875
    %930 = vmatpush.msra.mxu0 %v873
    %931 = vmatpush.msra.mxu0 %v871
    %932 = vmatpush.msra.mxu0 %v869
    %933 = vmatpush.msra.mxu0 %v867
    %934 = vmatpush.msra.mxu0 %v865
    %935 = vmatpush.msra.mxu0 %v863
    %936 = vmatmul.f32.gmra.mxu0 %v861
    %v937 = vpop.f32.mrf.mxu0
    %v938 = vadd.f32 %v897, %v937
    %939 = vdwg.mxu0
    %v940 = vtanh.pop %v918
    %v941 = vtanh.pop %v938
    %v944 = vrot.slane %v941, 6
    %vm945 = vcmask 1041408
    %v946 = vsel %vm945, %v940, %v944
    %vm948 = vcmask 519170
    %vm949 = vmor %vm948, %vm945
    %950 = vst.msk [vmem:[%s10] sm:$0xf] %vm949, %v946
    %v951 = vrot.slane %v940, 1
    %v952 = vrot.slane %v941, 1
    %v953 = vperm.slane %v940, 0
    %v954 = vperm.slane %v951, 0
    %v957 = vmul.f32 %v953, %v98
    %v958 = vmul.f32 %v953, %v103
    %v959 = vmul.f32 %v953, %v108
    %v960 = vmul.f32 %v953, %v113
    %v961 = vmul.f32 %v953, %v118
    %v962 = vmul.f32 %v953, %v123
    %v963 = vmul.f32 %v953, %v128
    %v964 = vmul.f32 %v953, %v133
    %v965 = vmul.f32 %v953, %v138
    %v966 = vmul.f32 %v953, %v143
    %v967 = vmul.f32 %v953, %v148
    %v968 = vmul.f32 %v953, %v153
    %v969 = vmul.f32 %v953, %v158
    %v970 = vmul.f32 %v953, %v163
    %v971 = vmul.f32 %v953, %v168
    %v972 = vmul.f32 %v953, %v173
    %v973 = vmul.f32 %v954, %v98
    %v974 = vmul.f32 %v954, %v103
    %v975 = vmul.f32 %v954, %v108
    %v976 = vmul.f32 %v954, %v113
    %v977 = vmul.f32 %v954, %v118
    %v978 = vmul.f32 %v954, %v123
    %v979 = vmul.f32 %v954, %v128
    %v980 = vmul.f32 %v954, %v133
    %v981 = vmul.f32 %v954, %v138
    %v982 = vmul.f32 %v954, %v143
    %v983 = vmul.f32 %v954, %v148
    %v984 = vmul.f32 %v954, %v153
    %v985 = vmul.f32 %v954, %v158
    %v986 = vmul.f32 %v954, %v163
    %v987 = vmul.f32 %v954, %v168
    %v988 = vmul.f32 %v954, %v173
    %v989 = vmul.f32 %v953, %v211
    %v990 = vmul.f32 %v953, %v215
    %v991 = vmul.f32 %v953, %v219
    %v992 = vmul.f32 %v953, %v223
    %v993 = vmul.f32 %v953, %v227
    %v994 = vmul.f32 %v953, %v231
    %v995 = vmul.f32 %v953, %v235
    %v996 = vmul.f32 %v953, %v239
    %v997 = vmul.f32 %v953, %v243
    %v998 = vmul.f32 %v953, %v247
    %v999 = vmul.f32 %v953, %v251
    %v1000 = vmul.f32 %v953, %v255
    %v1001 = vmul.f32 %v953, %v259
    %v1002 = vmul.f32 %v953, %v263
    %v1003 = vmul.f32 %v953, %v267
    %v1004 = vmul.f32 %v953, %v271
    %v1005 = vmul.f32 %v954, %v211
    %v1006 = vmul.f32 %v954, %v215
    %v1007 = vmul.f32 %v954, %v219
    %v1008 = vmul.f32 %v954, %v223
    %v1009 = vmul.f32 %v954, %v227
    %v1010 = vmul.f32 %v954, %v231
    %v1011 = vmul.f32 %v954, %v235
    %v1012 = vmul.f32 %v954, %v239
    %v1013 = vmul.f32 %v954, %v243
    %v1014 = vmul.f32 %v954, %v247
    %v1015 = vmul.f32 %v954, %v251
    %v1016 = vmul.f32 %v954, %v255
    %v1017 = vmul.f32 %v954, %v259
    %v1018 = vmul.f32 %v954, %v263
    %v1019 = vmul.f32 %v954, %v267
    %v1020 = vmul.f32 %v954, %v271
    %1053 = vrot.lane.b32.xlu0 %v989, 64
    %v1054 = vpop.permute.xlu0 %1053
    %1055 = vrot.lane.b32.xlu0 %v990, 64
    %v1056 = vpop.permute.xlu0 %1055
    %1057 = vrot.lane.b32.xlu0 %v991, 64
    %v1058 = vpop.permute.xlu0 %1057
    %1059 = vrot.lane.b32.xlu0 %v992, 64
    %v1060 = vpop.permute.xlu0 %1059
    %1061 = vrot.lane.b32.xlu0 %v993, 64
    %v1062 = vpop.permute.xlu0 %1061
    %1063 = vrot.lane.b32.xlu0 %v994, 64
    %v1064 = vpop.permute.xlu0 %1063
    %1065 = vrot.lane.b32.xlu0 %v995, 64
    %v1066 = vpop.permute.xlu0 %1065
    %1067 = vrot.lane.b32.xlu0 %v996, 64
    %v1068 = vpop.permute.xlu0 %1067
    %1069 = vrot.lane.b32.xlu0 %v997, 64
    %v1070 = vpop.permute.xlu0 %1069
    %1071 = vrot.lane.b32.xlu0 %v998, 64
    %v1072 = vpop.permute.xlu0 %1071
    %1073 = vrot.lane.b32.xlu0 %v999, 64
    %v1074 = vpop.permute.xlu0 %1073
    %1075 = vrot.lane.b32.xlu0 %v1000, 64
    %v1076 = vpop.permute.xlu0 %1075
    %1077 = vrot.lane.b32.xlu0 %v1001, 64
    %v1078 = vpop.permute.xlu0 %1077
    %1079 = vrot.lane.b32.xlu0 %v1002, 64
    %v1080 = vpop.permute.xlu0 %1079
    %1081 = vrot.lane.b32.xlu0 %v1003, 64
    %v1082 = vpop.permute.xlu0 %1081
    %1083 = vrot.lane.b32.xlu0 %v1004, 64
    %v1084 = vpop.permute.xlu0 %1083
    %1085 = vrot.lane.b32.xlu0 %v1005, 64
    %v1086 = vpop.permute.xlu0 %1085
    %1087 = vrot.lane.b32.xlu0 %v1006, 64
    %v1088 = vpop.permute.xlu0 %1087
    %1089 = vrot.lane.b32.xlu0 %v1007, 64
    %v1090 = vpop.permute.xlu0 %1089
    %1091 = vrot.lane.b32.xlu0 %v1008, 64
    %v1092 = vpop.permute.xlu0 %1091
    %1093 = vrot.lane.b32.xlu0 %v1009, 64
    %v1094 = vpop.permute.xlu0 %1093
    %1095 = vrot.lane.b32.xlu0 %v1010, 64
    %v1096 = vpop.permute.xlu0 %1095
    %1097 = vrot.lane.b32.xlu0 %v1011, 64
    %v1098 = vpop.permute.xlu0 %1097
    %1099 = vrot.lane.b32.xlu0 %v1012, 64
    %v1100 = vpop.permute.xlu0 %1099
    %1101 = vrot.lane.b32.xlu0 %v1013, 64
    %v1102 = vpop.permute.xlu0 %1101
    %1103 = vrot.lane.b32.xlu0 %v1014, 64
    %v1104 = vpop.permute.xlu0 %1103
    %1105 = vrot.lane.b32.xlu0 %v1015, 64
    %v1106 = vpop.permute.xlu0 %1105
    %1107 = vrot.lane.b32.xlu0 %v1016, 64
    %v1108 = vpop.permute.xlu0 %1107
    %1109 = vrot.lane.b32.xlu0 %v1017, 64
    %v1110 = vpop.permute.xlu0 %1109
    %1111 = vrot.lane.b32.xlu0 %v1018, 64
    %v1112 = vpop.permute.xlu0 %1111
    %1113 = vrot.lane.b32.xlu0 %v1019, 64
    %v1114 = vpop.permute.xlu0 %1113
    %1115 = vrot.lane.b32.xlu0 %v1020, 64
    %v1116 = vpop.permute.xlu0 %1115
    %v1149 = vadd.f32 %v957, %v1054
    %v1150 = vadd.f32 %v958, %v1056
    %v1151 = vadd.f32 %v959, %v1058
    %v1152 = vadd.f32 %v960, %v1060
    %v1153 = vadd.f32 %v961, %v1062
    %v1154 = vadd.f32 %v962, %v1064
    %v1155 = vadd.f32 %v963, %v1066
    %v1156 = vadd.f32 %v964, %v1068
    %v1157 = vadd.f32 %v965, %v1070
    %v1158 = vadd.f32 %v966, %v1072
    %v1159 = vadd.f32 %v967, %v1074
    %v1160 = vadd.f32 %v968, %v1076
    %v1161 = vadd.f32 %v969, %v1078
    %v1162 = vadd.f32 %v970, %v1080
    %v1163 = vadd.f32 %v971, %v1082
    %v1164 = vadd.f32 %v972, %v1084
    %v1165 = vadd.f32 %v973, %v1086
    %v1166 = vadd.f32 %v974, %v1088
    %v1167 = vadd.f32 %v975, %v1090
    %v1168 = vadd.f32 %v976, %v1092
    %v1169 = vadd.f32 %v977, %v1094
    %v1170 = vadd.f32 %v978, %v1096
    %v1171 = vadd.f32 %v979, %v1098
    %v1172 = vadd.f32 %v980, %v1100
    %v1173 = vadd.f32 %v981, %v1102
    %v1174 = vadd.f32 %v982, %v1104
    %v1175 = vadd.f32 %v983, %v1106
    %v1176 = vadd.f32 %v984, %v1108
    %v1177 = vadd.f32 %v985, %v1110
    %v1178 = vadd.f32 %v986, %v1112
    %v1179 = vadd.f32 %v987, %v1114
    %v1180 = vadd.f32 %v988, %v1116
    %v1181 = vperm.slane %v941, 0
    %v1182 = vperm.slane %v952, 0
    %v1185 = vmul.f32 %v1181, %v341
    %v1186 = vmul.f32 %v1181, %v345
    %v1187 = vmul.f32 %v1181, %v349
    %v1188 = vmul.f32 %v1181, %v353
    %v1189 = vmul.f32 %v1181, %v357
    %v1190 = vmul.f32 %v1181, %v361
    %v1191 = vmul.f32 %v1181, %v365
    %v1192 = vmul.f32 %v1181, %v369
    %v1193 = vmul.f32 %v1181, %v373
    %v1194 = vmul.f32 %v1181, %v377
    %v1195 = vmul.f32 %v1181, %v381
    %v1196 = vmul.f32 %v1181, %v385
    %v1197 = vmul.f32 %v1181, %v389
    %v1198 = vmul.f32 %v1181, %v393
    %v1199 = vmul.f32 %v1181, %v397
    %v1200 = vmul.f32 %v1181, %v401
    %v1201 = vmul.f32 %v1182, %v341
    %v1202 = vmul.f32 %v1182, %v345
    %v1203 = vmul.f32 %v1182, %v349
    %v1204 = vmul.f32 %v1182, %v353
    %v1205 = vmul.f32 %v1182, %v357
    %v1206 = vmul.f32 %v1182, %v361
    %v1207 = vmul.f32 %v1182, %v365
    %v1208 = vmul.f32 %v1182, %v369
    %v1209 = vmul.f32 %v1182, %v373
    %v1210 = vmul.f32 %v1182, %v377
    %v1211 = vmul.f32 %v1182, %v381
    %v1212 = vmul.f32 %v1182, %v385
    %v1213 = vmul.f32 %v1182, %v389
    %v1214 = vmul.f32 %v1182, %v393
    %v1215 = vmul.f32 %v1182, %v397
    %v1216 = vmul.f32 %v1182, %v401
    %v1217 = vadd.f32 %v1149, %v1185
    %v1218 = vadd.f32 %v1150, %v1186
    %v1219 = vadd.f32 %v1151, %v1187
    %v1220 = vadd.f32 %v1152, %v1188
    %v1221 = vadd.f32 %v1153, %v1189
    %v1222 = vadd.f32 %v1154, %v1190
    %v1223 = vadd.f32 %v1155, %v1191
    %v1224 = vadd.f32 %v1156, %v1192
    %v1225 = vadd.f32 %v1157, %v1193
    %v1226 = vadd.f32 %v1158, %v1194
    %v1227 = vadd.f32 %v1159, %v1195
    %v1228 = vadd.f32 %v1160, %v1196
    %v1229 = vadd.f32 %v1161, %v1197
    %v1230 = vadd.f32 %v1162, %v1198
    %v1231 = vadd.f32 %v1163, %v1199
    %v1232 = vadd.f32 %v1164, %v1200
    %v1233 = vadd.f32 %v1165, %v1201
    %v1234 = vadd.f32 %v1166, %v1202
    %v1235 = vadd.f32 %v1167, %v1203
    %v1236 = vadd.f32 %v1168, %v1204
    %v1237 = vadd.f32 %v1169, %v1205
    %v1238 = vadd.f32 %v1170, %v1206
    %v1239 = vadd.f32 %v1171, %v1207
    %v1240 = vadd.f32 %v1172, %v1208
    %v1241 = vadd.f32 %v1173, %v1209
    %v1242 = vadd.f32 %v1174, %v1210
    %v1243 = vadd.f32 %v1175, %v1211
    %v1244 = vadd.f32 %v1176, %v1212
    %v1245 = vadd.f32 %v1177, %v1213
    %v1246 = vadd.f32 %v1178, %v1214
    %v1247 = vadd.f32 %v1179, %v1215
    %v1248 = vadd.f32 %v1180, %v1216
    %v1249 = vadd.f32 %v1217, %v470
    %v1250 = vadd.f32 %v1218, %v475
    %v1251 = vadd.f32 %v1219, %v480
    %v1252 = vadd.f32 %v1220, %v485
    %v1253 = vadd.f32 %v1221, %v490
    %v1254 = vadd.f32 %v1222, %v495
    %v1255 = vadd.f32 %v1223, %v500
    %v1256 = vadd.f32 %v1224, %v505
    %v1257 = vadd.f32 %v1225, %v510
    %v1258 = vadd.f32 %v1226, %v515
    %v1259 = vadd.f32 %v1227, %v520
    %v1260 = vadd.f32 %v1228, %v525
    %v1261 = vadd.f32 %v1229, %v530
    %v1262 = vadd.f32 %v1230, %v535
    %v1263 = vadd.f32 %v1231, %v540
    %v1264 = vadd.f32 %v1232, %v545
    %v1265 = vadd.f32 %v1233, %v470
    %v1266 = vadd.f32 %v1234, %v475
    %v1267 = vadd.f32 %v1235, %v480
    %v1268 = vadd.f32 %v1236, %v485
    %v1269 = vadd.f32 %v1237, %v490
    %v1270 = vadd.f32 %v1238, %v495
    %v1271 = vadd.f32 %v1239, %v500
    %v1272 = vadd.f32 %v1240, %v505
    %v1273 = vadd.f32 %v1241, %v510
    %v1274 = vadd.f32 %v1242, %v515
    %v1275 = vadd.f32 %v1243, %v520
    %v1276 = vadd.f32 %v1244, %v525
    %v1277 = vadd.f32 %v1245, %v530
    %v1278 = vadd.f32 %v1246, %v535
    %v1279 = vadd.f32 %v1247, %v540
    %v1280 = vadd.f32 %v1248, %v545
    %v1281 = vmax.f32 %v1249, 0.0
    %v1282 = vmax.f32 %v1250, 0.0
    %v1283 = vmax.f32 %v1251, 0.0
    %v1284 = vmax.f32 %v1252, 0.0
    %v1285 = vmax.f32 %v1253, 0.0
    %v1286 = vmax.f32 %v1254, 0.0
    %v1287 = vmax.f32 %v1255, 0.0
    %v1288 = vmax.f32 %v1256, 0.0
    %v1289 = vmax.f32 %v1257, 0.0
    %v1290 = vmax.f32 %v1258, 0.0
    %v1291 = vmax.f32 %v1259, 0.0
    %v1292 = vmax.f32 %v1260, 0.0
    %v1293 = vmax.f32 %v1261, 0.0
    %v1294 = vmax.f32 %v1262, 0.0
    %v1295 = vmax.f32 %v1263, 0.0
    %v1296 = vmax.f32 %v1264, 0.0
    %v1297 = vmax.f32 %v1265, 0.0
    %v1298 = vmax.f32 %v1266, 0.0
    %v1299 = vmax.f32 %v1267, 0.0
    %v1300 = vmax.f32 %v1268, 0.0
    %v1301 = vmax.f32 %v1269, 0.0
    %v1302 = vmax.f32 %v1270, 0.0
    %v1303 = vmax.f32 %v1271, 0.0
    %v1304 = vmax.f32 %v1272, 0.0
    %v1305 = vmax.f32 %v1273, 0.0
    %v1306 = vmax.f32 %v1274, 0.0
    %v1307 = vmax.f32 %v1275, 0.0
    %v1308 = vmax.f32 %v1276, 0.0
    %v1309 = vmax.f32 %v1277, 0.0
    %v1310 = vmax.f32 %v1278, 0.0
    %v1311 = vmax.f32 %v1279, 0.0
    %v1312 = vmax.f32 %v1280, 0.0
    %v1313 = vsel %vm611, %v1281, -inf
    %1314 = vmax.xlane.f32.xlu0 %v1313
    %v1315 = vpop.xlane.xlu0 %1314
    %v1316 = vsel %vm611, %v1282, -inf
    %1317 = vmax.xlane.f32.xlu0 %v1316
    %v1318 = vpop.xlane.xlu0 %1317
    %v1319 = vsel %vm611, %v1283, -inf
    %1320 = vmax.xlane.f32.xlu0 %v1319
    %v1321 = vpop.xlane.xlu0 %1320
    %v1322 = vsel %vm611, %v1284, -inf
    %1323 = vmax.xlane.f32.xlu0 %v1322
    %v1324 = vpop.xlane.xlu0 %1323
    %v1325 = vsel %vm611, %v1285, -inf
    %1326 = vmax.xlane.f32.xlu0 %v1325
    %v1327 = vpop.xlane.xlu0 %1326
    %v1328 = vsel %vm611, %v1286, -inf
    %1329 = vmax.xlane.f32.xlu0 %v1328
    %v1330 = vpop.xlane.xlu0 %1329
    %v1331 = vsel %vm611, %v1287, -inf
    %1332 = vmax.xlane.f32.xlu0 %v1331
    %v1333 = vpop.xlane.xlu0 %1332
    %v1334 = vsel %vm611, %v1288, -inf
    %1335 = vmax.xlane.f32.xlu0 %v1334
    %v1336 = vpop.xlane.xlu0 %1335
    %v1337 = vsel %vm611, %v1289, -inf
    %1338 = vmax.xlane.f32.xlu0 %v1337
    %v1339 = vpop.xlane.xlu0 %1338
    %v1340 = vsel %vm611, %v1290, -inf
    %1341 = vmax.xlane.f32.xlu0 %v1340
    %v1342 = vpop.xlane.xlu0 %1341
    %v1343 = vsel %vm611, %v1291, -inf
    %1344 = vmax.xlane.f32.xlu0 %v1343
    %v1345 = vpop.xlane.xlu0 %1344
    %v1346 = vsel %vm611, %v1292, -inf
    %1347 = vmax.xlane.f32.xlu0 %v1346
    %v1348 = vpop.xlane.xlu0 %1347
    %v1349 = vsel %vm611, %v1293, -inf
    %1350 = vmax.xlane.f32.xlu0 %v1349
    %v1351 = vpop.xlane.xlu0 %1350
    %v1352 = vsel %vm611, %v1294, -inf
    %1353 = vmax.xlane.f32.xlu0 %v1352
    %v1354 = vpop.xlane.xlu0 %1353
    %v1355 = vsel %vm611, %v1295, -inf
    %1356 = vmax.xlane.f32.xlu0 %v1355
    %v1357 = vpop.xlane.xlu0 %1356
    %v1358 = vsel %vm611, %v1296, -inf
    %1359 = vmax.xlane.f32.xlu0 %v1358
    %v1360 = vpop.xlane.xlu0 %1359
    %v1361 = vsel %vm611, %v1297, -inf
    %1362 = vmax.xlane.f32.xlu0 %v1361
    %v1363 = vpop.xlane.xlu0 %1362
    %v1364 = vsel %vm611, %v1298, -inf
    %1365 = vmax.xlane.f32.xlu0 %v1364
    %v1366 = vpop.xlane.xlu0 %1365
    %v1367 = vsel %vm611, %v1299, -inf
    %1368 = vmax.xlane.f32.xlu0 %v1367
    %v1369 = vpop.xlane.xlu0 %1368
    %v1370 = vsel %vm611, %v1300, -inf
    %1371 = vmax.xlane.f32.xlu0 %v1370
    %v1372 = vpop.xlane.xlu0 %1371
    %v1373 = vsel %vm611, %v1301, -inf
    %1374 = vmax.xlane.f32.xlu0 %v1373
    %v1375 = vpop.xlane.xlu0 %1374
    %v1376 = vsel %vm611, %v1302, -inf
    %1377 = vmax.xlane.f32.xlu0 %v1376
    %v1378 = vpop.xlane.xlu0 %1377
    %v1379 = vsel %vm611, %v1303, -inf
    %1380 = vmax.xlane.f32.xlu0 %v1379
    %v1381 = vpop.xlane.xlu0 %1380
    %v1382 = vsel %vm611, %v1304, -inf
    %1383 = vmax.xlane.f32.xlu0 %v1382
    %v1384 = vpop.xlane.xlu0 %1383
    %v1385 = vsel %vm611, %v1305, -inf
    %1386 = vmax.xlane.f32.xlu0 %v1385
    %v1387 = vpop.xlane.xlu0 %1386
    %v1388 = vsel %vm611, %v1306, -inf
    %1389 = vmax.xlane.f32.xlu0 %v1388
    %v1390 = vpop.xlane.xlu0 %1389
    %v1391 = vsel %vm611, %v1307, -inf
    %1392 = vmax.xlane.f32.xlu0 %v1391
    %v1393 = vpop.xlane.xlu0 %1392
    %v1394 = vsel %vm611, %v1308, -inf
    %1395 = vmax.xlane.f32.xlu0 %v1394
    %v1396 = vpop.xlane.xlu0 %1395
    %v1397 = vsel %vm611, %v1309, -inf
    %1398 = vmax.xlane.f32.xlu0 %v1397
    %v1399 = vpop.xlane.xlu0 %1398
    %v1400 = vsel %vm611, %v1310, -inf
    %1401 = vmax.xlane.f32.xlu0 %v1400
    %v1402 = vpop.xlane.xlu0 %1401
    %v1403 = vsel %vm611, %v1311, -inf
    %1404 = vmax.xlane.f32.xlu0 %v1403
    %v1405 = vpop.xlane.xlu0 %1404
    %v1406 = vsel %vm611, %v1312, -inf
    %1407 = vmax.xlane.f32.xlu0 %v1406
    %v1408 = vpop.xlane.xlu0 %1407
    %v1409 = vmul.f32 %v1315, %v74
    %v1410 = vmul.f32 %v1318, %v75
    %v1411 = vmul.f32 %v1321, %v76
    %v1412 = vmul.f32 %v1324, %v77
    %v1413 = vmul.f32 %v1327, %v78
    %v1414 = vmul.f32 %v1330, %v79
    %v1415 = vmul.f32 %v1333, %v80
    %v1416 = vmul.f32 %v1336, %v81
    %v1417 = vmul.f32 %v1339, %v82
    %v1418 = vmul.f32 %v1342, %v83
    %v1419 = vmul.f32 %v1345, %v84
    %v1420 = vmul.f32 %v1348, %v85
    %v1421 = vmul.f32 %v1351, %v86
    %v1422 = vmul.f32 %v1354, %v87
    %v1423 = vmul.f32 %v1357, %v88
    %v1424 = vmul.f32 %v1360, %v89
    %v1425 = vmul.f32 %v1363, %v74
    %v1426 = vmul.f32 %v1366, %v75
    %v1427 = vmul.f32 %v1369, %v76
    %v1428 = vmul.f32 %v1372, %v77
    %v1429 = vmul.f32 %v1375, %v78
    %v1430 = vmul.f32 %v1378, %v79
    %v1431 = vmul.f32 %v1381, %v80
    %v1432 = vmul.f32 %v1384, %v81
    %v1433 = vmul.f32 %v1387, %v82
    %v1434 = vmul.f32 %v1390, %v83
    %v1435 = vmul.f32 %v1393, %v84
    %v1436 = vmul.f32 %v1396, %v85
    %v1437 = vmul.f32 %v1399, %v86
    %v1438 = vmul.f32 %v1402, %v87
    %v1439 = vmul.f32 %v1405, %v88
    %v1440 = vmul.f32 %v1408, %v89
    %v1441 = vsel %vm740, %v1409, 0.0
    %v1442 = vsel %vm740, %v1410, 0.0
    %v1443 = vadd.f32 %v1441, %v1442
    %v1444 = vsel %vm740, %v1411, 0.0
    %v1445 = vadd.f32 %v1443, %v1444
    %v1446 = vsel %vm740, %v1412, 0.0
    %v1447 = vadd.f32 %v1445, %v1446
    %v1448 = vsel %vm740, %v1413, 0.0
    %v1449 = vadd.f32 %v1447, %v1448
    %v1450 = vsel %vm740, %v1414, 0.0
    %v1451 = vadd.f32 %v1449, %v1450
    %v1452 = vsel %vm740, %v1415, 0.0
    %v1453 = vadd.f32 %v1451, %v1452
    %v1454 = vsel %vm740, %v1416, 0.0
    %v1455 = vadd.f32 %v1453, %v1454
    %v1456 = vsel %vm740, %v1417, 0.0
    %v1457 = vadd.f32 %v1455, %v1456
    %v1458 = vsel %vm740, %v1418, 0.0
    %v1459 = vadd.f32 %v1457, %v1458
    %v1460 = vsel %vm740, %v1419, 0.0
    %v1461 = vadd.f32 %v1459, %v1460
    %v1462 = vsel %vm740, %v1420, 0.0
    %v1463 = vadd.f32 %v1461, %v1462
    %v1464 = vsel %vm740, %v1421, 0.0
    %v1465 = vadd.f32 %v1463, %v1464
    %v1466 = vsel %vm740, %v1422, 0.0
    %v1467 = vadd.f32 %v1465, %v1466
    %v1468 = vsel %vm740, %v1423, 0.0
    %v1469 = vadd.f32 %v1467, %v1468
    %v1470 = vsel %vm740, %v1424, 0.0
    %v1471 = vadd.f32 %v1469, %v1470
    %v1472 = vrot.slane %v1471, 4
    %v1473 = vadd.f32 %v1471, %v1472
    %v1474 = vrot.slane %v1473, 2
    %v1475 = vadd.f32 %v1473, %v1474
    %v1476 = vrot.slane %v1475, 1
    %v1477 = vadd.f32 %v1475, %v1476
    %v1478 = vsel %vm740, %v1425, 0.0
    %v1479 = vsel %vm740, %v1426, 0.0
    %v1480 = vadd.f32 %v1478, %v1479
    %v1481 = vsel %vm740, %v1427, 0.0
    %v1482 = vadd.f32 %v1480, %v1481
    %v1483 = vsel %vm740, %v1428, 0.0
    %v1484 = vadd.f32 %v1482, %v1483
    %v1485 = vsel %vm740, %v1429, 0.0
    %v1486 = vadd.f32 %v1484, %v1485
    %v1487 = vsel %vm740, %v1430, 0.0
    %v1488 = vadd.f32 %v1486, %v1487
    %v1489 = vsel %vm740, %v1431, 0.0
    %v1490 = vadd.f32 %v1488, %v1489
    %v1491 = vsel %vm740, %v1432, 0.0
    %v1492 = vadd.f32 %v1490, %v1491
    %v1493 = vsel %vm740, %v1433, 0.0
    %v1494 = vadd.f32 %v1492, %v1493
    %v1495 = vsel %vm740, %v1434, 0.0
    %v1496 = vadd.f32 %v1494, %v1495
    %v1497 = vsel %vm740, %v1435, 0.0
    %v1498 = vadd.f32 %v1496, %v1497
    %v1499 = vsel %vm740, %v1436, 0.0
    %v1500 = vadd.f32 %v1498, %v1499
    %v1501 = vsel %vm740, %v1437, 0.0
    %v1502 = vadd.f32 %v1500, %v1501
    %v1503 = vsel %vm740, %v1438, 0.0
    %v1504 = vadd.f32 %v1502, %v1503
    %v1505 = vsel %vm740, %v1439, 0.0
    %v1506 = vadd.f32 %v1504, %v1505
    %v1507 = vsel %vm740, %v1440, 0.0
    %v1508 = vadd.f32 %v1506, %v1507
    %v1509 = vrot.slane %v1508, 4
    %v1510 = vadd.f32 %v1508, %v1509
    %v1511 = vrot.slane %v1510, 2
    %v1512 = vadd.f32 %v1510, %v1511
    %v1513 = vrot.slane %v1512, 1
    %v1514 = vadd.f32 %v1512, %v1513
    %v1515 = vadd.f32 %v1477, %v816
    %v1516 = vadd.f32 %v1514, %v816
    %v1517 = vsub.f32 0.0, %v818
    %v1518 = vsub.f32 0.0, %v819
    %v1519 = vmax.f32 %v1517, 0.0
    %v1520 = vmax.f32 %v1518, 0.0
    %v1521 = vand.u32 2147483647, %v1517
    %v1522 = vand.u32 2147483647, %v1518
    %v1523 = vsub.f32 0.0, %v1521
    %v1524 = vsub.f32 0.0, %v1522
    %v1525 = vmul.f32 %v1523, 1.442695
    %v1526 = vpow.pop %v1525
    %v1527 = vmul.f32 %v1524, 1.442695
    %v1528 = vpow.pop %v1527
    %v1529 = vadd.f32 %v1526, 1.0
    %v1530 = vadd.f32 %v1528, 1.0
    %v1531 = vlog2.pop %v1529
    %v1532 = vmul.f32 %v1531, 0.6931472
    %v1533 = vlog2.pop %v1530
    %v1534 = vmul.f32 %v1533, 0.6931472
    %v1535 = vadd.f32 %v1519, %v1532
    %v1536 = vadd.f32 %v1520, %v1534
    %v1537 = vmax.f32 %v1515, 0.0
    %v1538 = vmax.f32 %v1516, 0.0
    %v1539 = vand.u32 2147483647, %v1515
    %v1540 = vand.u32 2147483647, %v1516
    %v1541 = vsub.f32 0.0, %v1539
    %v1542 = vsub.f32 0.0, %v1540
    %v1543 = vmul.f32 %v1541, 1.442695
    %v1544 = vpow.pop %v1543
    %v1545 = vmul.f32 %v1542, 1.442695
    %v1546 = vpow.pop %v1545
    %v1547 = vadd.f32 %v1544, 1.0
    %v1548 = vadd.f32 %v1546, 1.0
    %v1549 = vlog2.pop %v1547
    %v1550 = vmul.f32 %v1549, 0.6931472
    %v1551 = vlog2.pop %v1548
    %v1552 = vmul.f32 %v1551, 0.6931472
    %v1553 = vadd.f32 %v1537, %v1550
    %v1554 = vadd.f32 %v1538, %v1552
    %v1555 = vadd.f32 %v1535, %v1553
    %v1556 = vadd.f32 %v1536, %v1554
    %v1559 = vrot.slane %v1556, 7
    %vm1560 = vcmask 1041409
    %v1561 = vsel %vm1560, %v1559, %v1555
    %vm1563 = vcmask 1024
    %v1564 = vsel %vm1563, %v1561, 0.0
    %1565 = vadd.xlane.f32.xlu0 %v1564
    %v1566 = vpop.xlane.xlu0 %1565
    %v1567 = vrot.slane %v1566, 4
    %v1568 = vadd.f32 %v1566, %v1567
    %v1569 = vrot.slane %v1568, 2
    %v1570 = vadd.f32 %v1568, %v1569
    %v1571 = vrot.slane %v1570, 1
    %v1572 = vadd.f32 %v1570, %v1571
    %s1573 = vtos %v1572
    %v1574 = vstv %s1573
    %v1575 = vrcp.pop 2.0
    %v1576 = vmul.f32 2.0, %v1575
    %v1577 = vsub.f32 1.0, %v1576
    %v1578 = vmul.f32 %v1575, %v1577
    %v1579 = vadd.f32 %v1575, %v1578
    %vm1580 = vweird.f32 %v1575
    %v1581 = vsel %vm1580, %v1575, %v1579
    %v1582 = vmul.f32 %v1574, %v1581
    %vm1583 = vcmask 0
    %1584 = vst.msk [vmem:[#allocation3] sm:$0x1] %vm1583, %v1582
    %v1585 = vsub.f32 0.0, %v1515
    %v1586 = vsub.f32 0.0, %v1516
    %v1587 = vmax.f32 %v1585, 0.0
    %v1588 = vmax.f32 %v1586, 0.0
    %v1589 = vand.u32 2147483647, %v1585
    %v1590 = vand.u32 2147483647, %v1586
    %v1591 = vsub.f32 0.0, %v1589
    %v1592 = vsub.f32 0.0, %v1590
    %v1593 = vmul.f32 %v1591, 1.442695
    %v1594 = vpow.pop %v1593
    %v1595 = vmul.f32 %v1592, 1.442695
    %v1596 = vpow.pop %v1595
    %v1597 = vadd.f32 %v1594, 1.0
    %v1598 = vadd.f32 %v1596, 1.0
    %v1599 = vlog2.pop %v1597
    %v1600 = vmul.f32 %v1599, 0.6931472
    %v1601 = vlog2.pop %v1598
    %v1602 = vmul.f32 %v1601, 0.6931472
    %v1603 = vadd.f32 %v1587, %v1600
    %v1604 = vadd.f32 %v1588, %v1602
    %v1607 = vrot.slane %v1604, 7
    %v1608 = vsel %vm1560, %v1607, %v1603
    %v1610 = vsel %vm1563, %v1608, 0.0
    %1611 = vadd.xlane.f32.xlu0 %v1610
    %v1612 = vpop.xlane.xlu0 %1611
    %v1613 = vrot.slane %v1612, 4
    %v1614 = vadd.f32 %v1612, %v1613
    %v1615 = vrot.slane %v1614, 2
    %v1616 = vadd.f32 %v1614, %v1615
    %v1617 = vrot.slane %v1616, 1
    %v1618 = vadd.f32 %v1616, %v1617
    %s1619 = vtos %v1618
    %v1620 = vstv %s1619
    %v1621 = vmul.f32 %v1620, %v1581
    %1622 = vst.msk [vmem:[#allocation5] sm:$0x1] %vm1583, %v1621
    // Predicated region
    $region42: #{vanilla_gan_forward.1} parent=1 // pred_check
      _
    $region43: #{vanilla_gan_forward.1} parent=1 // pred_check_branch
      %1624 = sbr.rel (0) target = $region45
    $region44: #{vanilla_gan_forward.1} parent=1 // pred_region
      _
    $region45: #{vanilla_gan_forward.1} parent=1 // pred_fallthru
      _
    // Predicated region
    $region46: #{vanilla_gan_forward.1} parent=1 // pred_check
      _
    $region47: #{vanilla_gan_forward.1} parent=1 // pred_check_branch
      %1626 = sbr.rel (0) target = $region49
    $region48: #{vanilla_gan_forward.1} parent=1 // pred_region
      %1628 = vsyncadd [#allocation4], 0
      %s1630 = sshll.u32 [#allocation3], 4
      %s1631 = int_to_ptr.vmem [resolvable:$true] %s1630
      %s1632 = sshll.u32 %s11, 4
      %s1633 = int_to_ptr.hbm [resolvable:$true] %s1632
      %1635 = dma.vmem_to_hbm [thread:$0]  %s1631, 16, %s1633, [#allocation4]
    $region49: #{vanilla_gan_forward.1} parent=1 // pred_fallthru
      _
    // Predicated region
    $region50: #{vanilla_gan_forward.1} parent=1 // pred_check
      _
    $region51: #{vanilla_gan_forward.1} parent=1 // pred_check_branch
      %1637 = sbr.rel (0) target = $region53
    $region52: #{vanilla_gan_forward.1} parent=1 // pred_region
      %1639 = vsyncadd [#allocation6], 0
      %s1641 = sshll.u32 [#allocation5], 4
      %s1642 = int_to_ptr.vmem [resolvable:$true] %s1641
      %s1643 = sshll.u32 %s12, 4
      %s1644 = int_to_ptr.hbm [resolvable:$true] %s1643
      %1646 = dma.vmem_to_hbm [thread:$0]  %s1642, 16, %s1644, [#allocation6]
    $region53: #{vanilla_gan_forward.1} parent=1 // pred_fallthru
      _
    // Predicated region
    $region54: #{vanilla_gan_forward.1} parent=1 // pred_check
      _
    $region55: #{vanilla_gan_forward.1} parent=1 // pred_check_branch
      %1648 = sbr.rel (0) target = $region57
    $region56: #{vanilla_gan_forward.1} parent=1 // pred_region
      _
    $region57: #{vanilla_gan_forward.1} parent=1 // pred_fallthru
      _
    // Predicated region
    $region58: #{vanilla_gan_forward.1} parent=1 // pred_check
      _
    $region59: #{vanilla_gan_forward.1} parent=1 // pred_check_branch
      %1650 = sbr.rel (0) target = $region61
    $region60: #{vanilla_gan_forward.1} parent=1 // pred_region
      %1652 = dma.done [#allocation4], 16
    $region61: #{vanilla_gan_forward.1} parent=1 // pred_fallthru
      _
    // Predicated region
    $region62: #{vanilla_gan_forward.1} parent=1 // pred_check
      _
    $region63: #{vanilla_gan_forward.1} parent=1 // pred_check_branch
      %1654 = sbr.rel (0) target = $region65
    $region64: #{vanilla_gan_forward.1} parent=1 // pred_region
      %1656 = dma.done [#allocation6], 16
    $region65: #{vanilla_gan_forward.1} parent=1 // pred_fallthru
      _
    %1657 = vsyncpa [#allocation4], 1
    %1658 = vsyncpa [#allocation6], 1

</llo_original>
